<compile_context>
chip_gen: v7x
topology: tpu7x:2x2x1
jax: 0.10.0
libtpu: 0.0.40
codegen_flags: <defaults>
</compile_context>

<pallas_src>
import functools
import math

import jax
import jax.numpy as jnp
from jax.experimental import pallas as pl
from jax.experimental.pallas import tpu as pltpu

COMPUTE_DTYPE = jnp.bfloat16      # MXU operand dtype (accumulation stays f32)
LN_EPS = 1e-5
LANE = 128


def _round_up(x, m):
    return ((x + m - 1) // m) * m


def _default_vmem_limit():
    """~3/4 of physical VMEM: 96 MiB on v5e/v6e (128 MiB phys), 48 MiB on v7x (64 MiB)."""
    try:
        cap = getattr(pltpu.get_tpu_info(), "vmem_capacity_bytes", None)
        if cap:
            return int(min(96 * 1024 * 1024, (cap * 3) // 4))
    except Exception:
        pass
    return 48 * 1024 * 1024       # safe everywhere


VMEM_LIMIT_BYTES = _default_vmem_limit()


# --------------------------------------------------------------------------
# Tile-size helpers
# --------------------------------------------------------------------------
def _sublane_multiple(*dtypes):
    """Required second-minor block multiple (8 for 32-bit, 16 for bf16, 32 for 8-bit)."""
    m = 8
    for d in dtypes:
        iz = jnp.dtype(d).itemsize
        if iz == 2:
            m = max(m, 16)
        elif iz == 1:
            m = max(m, 32)
    return m


def _pick_row_tile(m, mult, pref=256):
    if m % mult != 0:
        return m                          # single full block (always legal)
    tm = min(pref, m)
    tm -= tm % mult
    while tm > mult and m % tm != 0:
        tm -= mult
    tm = max(tm, mult)
    # Prefer >=2 row blocks so the "parallel" axis can shard across v7x's 2 TensorCores.
    if m // tm < 2 and m >= 2 * mult:
        half = (m // 2) // mult * mult
        while half >= mult and m % half != 0:
            half -= mult
        if half >= mult:
            tm = half
    return tm


def _pick_lane_tile(n, pref=512):
    assert n % LANE == 0, f"lane dim {n} must be pre-padded to a multiple of {LANE}"
    if n <= pref:
        return n
    t = pref - pref % LANE
    while t > LANE and n % t != 0:
        t -= LANE
    return max(t, LANE)


# --------------------------------------------------------------------------
# Kernel 1: tiled linear  y = act(x @ W + b)        (optionally bf16 output)
# --------------------------------------------------------------------------
def _linear_kernel(x_ref, w_ref, b_ref, o_ref, acc_ref, *, activation):
    k = pl.program_id(2)

    @pl.when(k == 0)
    def _():
        acc_ref[...] = jnp.zeros_like(acc_ref)

    acc_ref[...] += jnp.dot(x_ref[...].astype(w_ref.dtype), w_ref[...],
                            preferred_element_type=jnp.float32)

    @pl.when(k == pl.num_programs(2) - 1)
    def _():
        y = acc_ref[...] + b_ref[...]                 # f32 epilogue
        if activation == "relu":
            y = jnp.maximum(y, 0.0)
        o_ref[...] = y.astype(o_ref.dtype)


def pallas_linear(x, w, b, *, activation=None, out_dtype=jnp.float32,
                  tm_pref=256, tn_pref=512, tk_pref=512):
    """x: (M, K); w: (K, N) pre-padded bf16; b: (1, N) f32 -> (M, N) out_dtype."""
    M, K = x.shape
    Kw, N = w.shape
    assert K == Kw
    mult = _sublane_multiple(x.dtype, out_dtype)
    tm = _pick_row_tile(M, mult, tm_pref)
    tk = _pick_lane_tile(K, tk_pref)
    tn = _pick_lane_tile(N, tn_pref)
    gm, gn, gk = M // tm, N // tn, K // tk

    cost = pl.CostEstimate(
        flops=2 * M * N * K,
        transcendentals=0,
        bytes_accessed=int(x.size * x.dtype.itemsize * gn
                           + w.size * w.dtype.itemsize * gm
                           + b.size * b.dtype.itemsize
                           + M * N * jnp.dtype(out_dtype).itemsize),
    )

    return pl.pallas_call(
        functools.partial(_linear_kernel, activation=activation),
        out_shape=jax.ShapeDtypeStruct((M, N), out_dtype),
        grid_spec=pltpu.PrefetchScalarGridSpec(
            num_scalar_prefetch=0,
            grid=(gm, gn, gk),
            in_specs=[
                pl.BlockSpec((tm, tk), lambda i, j, k: (i, k)),
                pl.BlockSpec((tk, tn), lambda i, j, k: (k, j)),
                pl.BlockSpec((1, tn), lambda i, j, k: (0, j)),
            ],
            out_specs=pl.BlockSpec((tm, tn), lambda i, j, k: (i, j)),
            scratch_shapes=[pltpu.VMEM((tm, tn), jnp.float32)],
        ),
        compiler_params=pltpu.CompilerParams(
            dimension_semantics=("parallel", "parallel", "arbitrary"),
            vmem_limit_bytes=VMEM_LIMIT_BYTES,
        ),
        cost_estimate=cost,
    )(x, w, b)


# --------------------------------------------------------------------------
# Kernel 2: tiled linear fused with residual-add + LayerNorm epilogue
#           out = LayerNorm(x @ W + b + res) * gamma + beta
# --------------------------------------------------------------------------
def _linear_ln_kernel(x_ref, w_ref, b_ref, res_ref, g_ref, bb_ref, o_ref, acc_ref,
                      *, n_valid, eps):
    k = pl.program_id(1)

    @pl.when(k == 0)
    def _():
        acc_ref[...] = jnp.zeros_like(acc_ref)

    acc_ref[...] += jnp.dot(x_ref[...].astype(w_ref.dtype), w_ref[...],
                            preferred_element_type=jnp.float32)

    @pl.when(k == pl.num_programs(1) - 1)
    def _():
        # Padded columns of acc / bias / res are all zero by construction.
        y = acc_ref[...] + b_ref[...] + res_ref[...].astype(jnp.float32)
        mean = jnp.sum(y, axis=-1, keepdims=True) * (1.0 / n_valid)
        col = jax.lax.broadcasted_iota(jnp.int32, y.shape, 1)
        d = jnp.where(col < n_valid, y - mean, 0.0)          # two-pass, masked deviations
        var = jnp.sum(d * d, axis=-1, keepdims=True) * (1.0 / n_valid)
        inv = jax.lax.rsqrt(var + eps)                       # EUP
        o_ref[...] = (d * inv * g_ref[...] + bb_ref[...]).astype(o_ref.dtype)


def pallas_linear_ln(x, w, b, *, residual, gamma, beta, n_valid, eps=LN_EPS,
                     out_dtype=jnp.float32, tm_pref=256, tk_pref=512):
    """Fused (x @ W + b) + residual -> LayerNorm over the first n_valid features."""
    M, K = x.shape
    Kw, N = w.shape
    assert K == Kw
    mult = _sublane_multiple(x.dtype, residual.dtype, out_dtype)
    tm = _pick_row_tile(M, mult, tm_pref)
    tk = _pick_lane_tile(K, tk_pref)
    gm, gk = M // tm, K // tk

    cost = pl.CostEstimate(
        flops=2 * M * N * K + 10 * M * N,
        transcendentals=M,
        bytes_accessed=int(x.size * x.dtype.itemsize
                           + w.size * w.dtype.itemsize * gm
                           + residual.size * residual.dtype.itemsize
                           + M * N * jnp.dtype(out_dtype).itemsize),
    )

    return pl.pallas_call(
        functools.partial(_linear_ln_kernel, n_valid=int(n_valid), eps=eps),
        out_shape=jax.ShapeDtypeStruct((M, N), out_dtype),
        grid_spec=pltpu.PrefetchScalarGridSpec(
            num_scalar_prefetch=0,
            grid=(gm, gk),
            in_specs=[
                pl.BlockSpec((tm, tk), lambda i, k: (i, k)),
                pl.BlockSpec((tk, N), lambda i, k: (k, 0)),
                pl.BlockSpec((1, N), lambda i, k: (0, 0)),
                pl.BlockSpec((tm, N), lambda i, k: (i, 0)),   # residual (fetched once per i)
                pl.BlockSpec((1, N), lambda i, k: (0, 0)),    # gamma
                pl.BlockSpec((1, N), lambda i, k: (0, 0)),    # beta
            ],
            out_specs=pl.BlockSpec((tm, N), lambda i, k: (i, 0)),
            scratch_shapes=[pltpu.VMEM((tm, N), jnp.float32)],
        ),
        compiler_params=pltpu.CompilerParams(
            dimension_semantics=("parallel", "arbitrary"),
            vmem_limit_bytes=VMEM_LIMIT_BYTES,
        ),
        cost_estimate=cost,
    )(x, w, b, residual, gamma, beta)


# --------------------------------------------------------------------------
# Kernel 3: causal self-attention, one batch element (all heads) per grid step.
# Q/K/V are read directly out of the padded QKV buffer (no XLA transposes).
# --------------------------------------------------------------------------
def _attention_kernel(qkv_ref, o_ref, *, nhead, head_dim, e_pad, scale):
    S = o_ref.shape[1]
    o_ref[...] = jnp.zeros(o_ref.shape, o_ref.dtype)       # padded head columns stay 0
    row = jax.lax.broadcasted_iota(jnp.int32, (S, S), 0)
    col = jax.lax.broadcasted_iota(jnp.int32, (S, S), 1)
    causal = col <= row
    for h in range(nhead):                                  # static unroll over real heads
        off = h * head_dim
        q = qkv_ref[0, :, off:off + head_dim]               # (S, D) bf16
        k = qkv_ref[0, :, e_pad + off:e_pad + off + head_dim]
        v = qkv_ref[0, :, 2 * e_pad + off:2 * e_pad + off + head_dim]
        # q @ k^T via dot_general contracting last dims (no explicit transpose).
        s = jax.lax.dot_general(q, k, (((1,), (1,)), ((), ())),
                                preferred_element_type=jnp.float32) * scale
        s = jnp.where(causal, s, -jnp.inf)                  # diagonal always kept -> no NaN
        m = jnp.max(s, axis=-1, keepdims=True)
        p = jnp.exp(s - m)
        denom = jnp.sum(p, axis=-1, keepdims=True)
        p = p * pl.reciprocal(denom, approx=True)           # EUP
        o = jnp.dot(p.astype(v.dtype), v, preferred_element_type=jnp.float32)
        o_ref[0, :, off:off + head_dim] = o.astype(o_ref.dtype)


def pallas_attention(qkv3, *, nhead, head_dim, e_pad, scale, out_dtype=jnp.bfloat16):
    """qkv3: (B, S, 3*Ep) bf16 (q at [0:E], k at [Ep:Ep+E], v at [2Ep:2Ep+E]) -> (B, S, Ep)."""
    B, S, three_ep = qkv3.shape
    return pl.pallas_call(
        functools.partial(_attention_kernel, nhead=nhead, head_dim=head_dim,
                          e_pad=e_pad, scale=scale),
        out_shape=jax.ShapeDtypeStruct((B, S, e_pad), out_dtype),
        grid=(B,),
        in_specs=[pl.BlockSpec((1, S, three_ep), lambda b: (b, 0, 0))],
        out_specs=pl.BlockSpec((1, S, e_pad), lambda b: (b, 0, 0)),
        compiler_params=pltpu.CompilerParams(
            dimension_semantics=("parallel",),              # B blocks -> megacore shardable
            vmem_limit_bytes=VMEM_LIMIT_BYTES,
        ),
    )(qkv3)


# --------------------------------------------------------------------------
# Kernel 4: entry kernel -- pad to lane-dense layout, scale by sqrt(ninp), add PE
# --------------------------------------------------------------------------
def _pe_kernel(x_ref, pe_ref, o_ref, *, scale, n_valid):
    pe = pe_ref[...]                                        # (S, Ep) f32, padded cols zero
    o_ref[...] = jnp.zeros(o_ref.shape, o_ref.dtype)
    o_ref[:, :, :n_valid] = x_ref[...] * scale + pe[None, :, :n_valid]


def pallas_pos_encode(x_bse, pe_pad, *, scale, n_valid):
    """x_bse: (B, S, E) f32; pe_pad: (S, Ep) f32 -> (B, S, Ep) f32 (padded cols zero)."""
    B, S, E = x_bse.shape
    Ep = pe_pad.shape[1]
    # TODO(synk): tile over S for very large S*B; single lane-dense block is fine here.
    return pl.pallas_call(
        functools.partial(_pe_kernel, scale=scale, n_valid=n_valid),
        out_shape=jax.ShapeDtypeStruct((B, S, Ep), jnp.float32),
        grid=(1,),
        in_specs=[
            pl.BlockSpec((B, S, E), lambda i: (0, 0, 0)),
            pl.BlockSpec((S, Ep), lambda i: (0, 0)),
        ],
        out_specs=pl.BlockSpec((B, S, Ep), lambda i: (0, 0, 0)),
        compiler_params=pltpu.CompilerParams(
            dimension_semantics=("arbitrary",),
            vmem_limit_bytes=VMEM_LIMIT_BYTES,
        ),
    )(x_bse, pe_pad)


# --------------------------------------------------------------------------
# Model assembly (eval-mode forward) -- activations stay (B*S, Ep)-padded throughout
# --------------------------------------------------------------------------
def _encoder_layer_forward(p, x2d, *, S, B, E, Ep, nhead, head_dim):
    # --- self attention ---
    qkv = pallas_linear(x2d, p["in_proj_w"], p["in_proj_b"],
                        out_dtype=COMPUTE_DTYPE)                     # (B*S, 3Ep) bf16
    qkv3 = qkv.reshape(B, S, 3 * Ep)                                 # free (major-dim split)
    attn = pallas_attention(qkv3, nhead=nhead, head_dim=head_dim, e_pad=Ep,
                            scale=1.0 / math.sqrt(head_dim))         # (B, S, Ep) bf16
    attn2d = attn.reshape(B * S, Ep)
    # out_proj + residual + LayerNorm1 fused
    x1 = pallas_linear_ln(attn2d, p["out_proj_w"], p["out_proj_b"],
                          residual=x2d, gamma=p["ln1_g"], beta=p["ln1_b"],
                          n_valid=E)                                 # (B*S, Ep) f32

    # --- feed-forward ---
    h = pallas_linear(x1, p["w1"], p["b1"], activation="relu",
                      out_dtype=COMPUTE_DTYPE)                       # (B*S, Hidp) bf16
    x2 = pallas_linear_ln(h, p["w2"], p["b2"],
                          residual=x1, gamma=p["ln2_g"], beta=p["ln2_b"],
                          n_valid=E)                                 # (B*S, Ep) f32
    return x2


def te_model_forward(pparams, src, *, nhead):
    S, B, E = src.shape
    Ep = pparams["pe"].shape[1]
    head_dim = E // nhead
    assert head_dim * nhead == E

    x = jnp.transpose(src, (1, 0, 2))                                # (B, S, E), once
    x = pallas_pos_encode(x, pparams["pe"][:S], scale=math.sqrt(E), n_valid=E)
    x2d = x.reshape(B * S, Ep)
    for layer in pparams["layers"]:
        x2d = _encoder_layer_forward(layer, x2d, S=S, B=B, E=E, Ep=Ep,
                                     nhead=nhead, head_dim=head_dim)
    out = x2d.reshape(B, S, Ep)[:, :, :E]                            # exit padded layout, once
    return jnp.transpose(out, (1, 0, 2))                             # back to (S, B, E)


# --------------------------------------------------------------------------
# Parameter init (unpadded, PyTorch-style) + one-time padded/bf16 preparation
# --------------------------------------------------------------------------
def positional_encoding_table(max_len, d_model):
    position = jnp.arange(max_len, dtype=jnp.float32)[:, None]
    div_term = jnp.exp(jnp.arange(0, d_model, 2, dtype=jnp.float32)
                       * (-math.log(10000.0) / d_model))
    pe = jnp.zeros((max_len, d_model), jnp.float32)
    pe = pe.at[:, 0::2].set(jnp.sin(position * div_term))
    pe = pe.at[:, 1::2].set(jnp.cos(position * div_term))
    return pe[:, None, :]                                            # (max_len, 1, d_model)


def init_params(key, ninp, nhead, nhid, nlayers, seq_len):
    E = ninp
    layer_keys = jax.random.split(key, nlayers)
    layers = []
    for lk in layer_keys:
        k1, k2, k3, k4, k5, k6 = jax.random.split(lk, 6)
        xb = math.sqrt(6.0 / (E + 3 * E))                            # xavier_uniform
        bo = 1.0 / math.sqrt(E)
        bh = 1.0 / math.sqrt(nhid)
        layers.append(dict(
            in_proj_w=jax.random.uniform(k1, (E, 3 * E), jnp.float32, -xb, xb),
            in_proj_b=jnp.zeros((3 * E,), jnp.float32),
            out_proj_w=jax.random.uniform(k2, (E, E), jnp.float32, -bo, bo),
            out_proj_b=jnp.zeros((E,), jnp.float32),
            w1=jax.random.uniform(k3, (E, nhid), jnp.float32, -bo, bo),
            b1=jax.random.uniform(k4, (nhid,), jnp.float32, -bo, bo),
            w2=jax.random.uniform(k5, (nhid, E), jnp.float32, -bh, bh),
            b2=jax.random.uniform(k6, (E,), jnp.float32, -bh, bh),
            ln1_g=jnp.ones((E,), jnp.float32), ln1_b=jnp.zeros((E,), jnp.float32),
            ln2_g=jnp.ones((E,), jnp.float32), ln2_b=jnp.zeros((E,), jnp.float32),
        ))
    return dict(pe=positional_encoding_table(seq_len, E), layers=layers)


def _pad2(w, rp, cp, dtype):
    return jnp.zeros((rp, cp), dtype).at[:w.shape[0], :w.shape[1]].set(w.astype(dtype))


def _pad_row(v, cp):
    return jnp.zeros((1, cp), jnp.float32).at[0, :v.shape[0]].set(v.astype(jnp.float32))


def prepare_params(params, ninp, nhid):
    """One-time padding + bf16 cast of all weights (the 'pre-pad at init' step)."""
    E = ninp
    Ep = _round_up(E, LANE)
    Hidp = _round_up(nhid, LANE)

    pe = params["pe"][:, 0, :]                                       # (max_len, E)
    pe_pad = jnp.zeros((pe.shape[0], Ep), jnp.float32).at[:, :E].set(pe)

    layers = []
    for p in params["layers"]:
        wq, wk, wv = jnp.split(p["in_proj_w"], 3, axis=1)
        bq, bk, bv = jnp.split(p["in_proj_b"], 3)
        in_w = jnp.zeros((Ep, 3 * Ep), COMPUTE_DTYPE)
        in_w = in_w.at[:E, 0:E].set(wq.astype(COMPUTE_DTYPE))
        in_w = in_w.at[:E, Ep:Ep + E].set(wk.astype(COMPUTE_DTYPE))
        in_w = in_w.at[:E, 2 * Ep:2 * Ep + E].set(wv.astype(COMPUTE_DTYPE))
        in_b = jnp.zeros((1, 3 * Ep), jnp.float32)
        in_b = in_b.at[0, 0:E].set(bq).at[0, Ep:Ep + E].set(bk).at[0, 2 * Ep:2 * Ep + E].set(bv)
        layers.append(dict(
            in_proj_w=in_w, in_proj_b=in_b,
            out_proj_w=_pad2(p["out_proj_w"], Ep, Ep, COMPUTE_DTYPE),
            out_proj_b=_pad_row(p["out_proj_b"], Ep),
            w1=_pad2(p["w1"], Ep, Hidp, COMPUTE_DTYPE),
            b1=_pad_row(p["b1"], Hidp),
            w2=_pad2(p["w2"], Hidp, Ep, COMPUTE_DTYPE),
            b2=_pad_row(p["b2"], Ep),
            ln1_g=_pad_row(p["ln1_g"], Ep), ln1_b=_pad_row(p["ln1_b"], Ep),
            ln2_g=_pad_row(p["ln2_g"], Ep), ln2_b=_pad_row(p["ln2_b"], Ep),
        ))
    return dict(pe=pe_pad, layers=layers)


# --------------------------------------------------------------------------
# Pure-JAX reference (same math, same bf16 storage points)
# --------------------------------------------------------------------------
def _ref_linear(x, w, b, act=None):
    y = jnp.dot(x.astype(COMPUTE_DTYPE), w.astype(COMPUTE_DTYPE),
                preferred_element_type=jnp.float32) + b
    return jnp.maximum(y, 0.0) if act == "relu" else y


def _ref_layernorm(y, g, b, eps=LN_EPS):
    mean = jnp.mean(y, axis=-1, keepdims=True)
    var = jnp.mean((y - mean) ** 2, axis=-1, keepdims=True)
    return (y - mean) * jax.lax.rsqrt(var + eps) * g + b


def _ref_encoder_layer(p, x, H):
    S, B, E = x.shape
    D = E // H
    x2d = x.reshape(S * B, E)
    qkv = _ref_linear(x2d, p["in_proj_w"], p["in_proj_b"]).astype(COMPUTE_DTYPE)
    qkv = qkv.reshape(S, B, 3, H, D)
    q = qkv[:, :, 0].transpose(1, 2, 0, 3).reshape(B * H, S, D)
    k = qkv[:, :, 1].transpose(1, 2, 0, 3).reshape(B * H, S, D)
    v = qkv[:, :, 2].transpose(1, 2, 0, 3).reshape(B * H, S, D)
    s = jnp.einsum("bqd,bkd->bqk", q, k,
                   preferred_element_type=jnp.float32) / math.sqrt(D)
    mask = jnp.tril(jnp.ones((S, S), bool))
    s = jnp.where(mask[None], s, -jnp.inf)
    p_attn = jax.nn.softmax(s, axis=-1)
    o = jnp.einsum("bqk,bkd->bqd", p_attn.astype(COMPUTE_DTYPE), v,
                   preferred_element_type=jnp.float32)
    o = o.reshape(B, H, S, D).transpose(2, 0, 1, 3).reshape(S * B, E)
    sa = _ref_linear(o, p["out_proj_w"], p["out_proj_b"])
    x1 = _ref_layernorm(x2d + sa, p["ln1_g"], p["ln1_b"])
    ff = _ref_linear(_ref_linear(x1, p["w1"], p["b1"], act="relu"), p["w2"], p["b2"])
    x2 = _ref_layernorm(x1 + ff, p["ln2_g"], p["ln2_b"])
    return x2.reshape(S, B, E)


def reference_forward(params, src, nhead):
    S, B, E = src.shape
    x = src * math.sqrt(E) + params["pe"][:S]
    for p in params["layers"]:
        x = _ref_encoder_layer(p, x, nhead)
    return x


# --------------------------------------------------------------------------
if __name__ == "__main__":
    key = jax.random.PRNGKey(0)
    k_src, k_par = jax.random.split(key)

    seq_len, batch, ninp, nhead, nhid, nlayers = 8, 2, 32, 4, 64, 2
    src = jax.random.normal(k_src, (seq_len, batch, ninp), jnp.float32)

    params = init_params(k_par, ninp, nhead, nhid, nlayers, seq_len)
    pparams = prepare_params(params, ninp, nhid)      # one-time padded/bf16 weights

    fwd = jax.jit(functools.partial(te_model_forward, nhead=nhead))
    out = fwd(pparams, src)
    out = jax.block_until_ready(out)

    ref = reference_forward(params, src, nhead)
    assert out.shape == (seq_len, batch, ninp)
    assert bool(jnp.all(jnp.isfinite(out))), "non-finite output"
    max_err = float(jnp.max(jnp.abs(out - ref)))
    assert jnp.allclose(out, ref, atol=5e-3, rtol=5e-3), f"mismatch vs reference (max abs err {max_err})"
    print("KERNEL_OK")
</pallas_src>

<mosaic_0001>
module attributes {stable_mosaic.version = 11 : i64} {
  func.func @_linear_kernel(%arg0: i32, %arg1: i32, %arg2: i32, %arg3: memref<16x128xf32, #tpu.memory_space<vmem>>, %arg4: memref<128x384xbf16, #tpu.memory_space<vmem>>, %arg5: memref<1x384xf32, #tpu.memory_space<vmem>>, %arg6: memref<16x384xbf16, #tpu.memory_space<vmem>>, %arg7: memref<16x384xf32, #tpu.memory_space<vmem>>) attributes {dimension_semantics = [#tpu.dimension_semantics<parallel>, #tpu.dimension_semantics<parallel>, #tpu.dimension_semantics<arbitrary>], iteration_bounds = array<i64: 1, 1, 1>, scalar_prefetch = 0 : i64, scratch_operands = 1 : i64, tpu.core_type = #tpu.core_type<tc>, window_params = [{transform_indices = @transform_0, window_bounds = array<i64: 16, 128>}, {transform_indices = @transform_1, window_bounds = array<i64: 128, 384>}, {transform_indices = @transform_2, window_bounds = array<i64: 1, 384>}, {transform_indices = @transform_3, window_bounds = array<i64: 16, 384>}]} {
    %c0_i32 = arith.constant 0 : i32
    %0 = arith.cmpi eq, %arg2, %c0_i32 : i32
    %1 = arith.extui %0 : i1 to i32
    %c0_i32_0 = arith.constant 0 : i32
    %2 = arith.cmpi ne, %1, %c0_i32_0 : i32
    scf.if %2 {
      %cst_10 = arith.constant 0.000000e+00 : f32
      %13 = vector.broadcast %cst_10 : f32 to vector<16x384xf32>
      %c0_11 = arith.constant 0 : index
      %c0_12 = arith.constant 0 : index
      %14 = vector.load %arg7[%c0_11, %c0_12] : memref<16x384xf32, #tpu.memory_space<vmem>>, vector<16x384xf32>
      tpu.vector_store %arg7[%c0_11, %c0_12], %13 {strides = array<i32>} : memref<16x384xf32, #tpu.memory_space<vmem>>, vector<16x384xf32>,
    } else {
    }
    %c0 = arith.constant 0 : index
    %c0_1 = arith.constant 0 : index
    %3 = vector.load %arg7[%c0, %c0_1] : memref<16x384xf32, #tpu.memory_space<vmem>>, vector<16x384xf32>
    %c0_2 = arith.constant 0 : index
    %c0_3 = arith.constant 0 : index
    %4 = vector.load %arg3[%c0_2, %c0_3] : memref<16x128xf32, #tpu.memory_space<vmem>>, vector<16x128xf32>
    %5 = arith.truncf %4 : vector<16x128xf32> to vector<16x128xbf16>
    %c0_4 = arith.constant 0 : index
    %c0_5 = arith.constant 0 : index
    %6 = vector.load %arg4[%c0_4, %c0_5] : memref<128x384xbf16, #tpu.memory_space<vmem>>, vector<128x384xbf16>
    %cst = arith.constant dense<0.000000e+00> : vector<16x384xf32>
    %7 = tpu.matmul %5, %6, %cst {dimension_numbers = #tpu.dot_dimension_numbers<[1], [0], [0], [1], [0, 0, 1, 1], [], []>} : vector<16x128xbf16>, vector<128x384xbf16>, vector<16x384xf32> -> vector<16x384xf32>
    %8 = arith.addf %3, %7 : vector<16x384xf32>
    %c0_6 = arith.constant 0 : index
    %c0_7 = arith.constant 0 : index
    %9 = vector.load %arg7[%c0_6, %c0_7] : memref<16x384xf32, #tpu.memory_space<vmem>>, vector<16x384xf32>
    tpu.vector_store %arg7[%c0_6, %c0_7], %8 {strides = array<i32>} : memref<16x384xf32, #tpu.memory_space<vmem>>, vector<16x384xf32>,
    %c0_i32_8 = arith.constant 0 : i32
    %10 = arith.cmpi eq, %arg2, %c0_i32_8 : i32
    %11 = arith.extui %10 : i1 to i32
    %c0_i32_9 = arith.constant 0 : i32
    %12 = arith.cmpi ne, %11, %c0_i32_9 : i32
    scf.if %12 {
      %c0_10 = arith.constant 0 : index
      %c0_11 = arith.constant 0 : index
      %13 = vector.load %arg7[%c0_10, %c0_11] : memref<16x384xf32, #tpu.memory_space<vmem>>, vector<16x384xf32>
      %c0_12 = arith.constant 0 : index
      %c0_13 = arith.constant 0 : index
      %14 = vector.load %arg5[%c0_12, %c0_13] : memref<1x384xf32, #tpu.memory_space<vmem>>, vector<1x384xf32>
      %15 = vector.broadcast %14 : vector<1x384xf32> to vector<16x384xf32>
      %16 = arith.addf %13, %15 : vector<16x384xf32>
      %17 = arith.truncf %16 : vector<16x384xf32> to vector<16x384xbf16>
      %c0_14 = arith.constant 0 : index
      %c0_15 = arith.constant 0 : index
      %18 = vector.load %arg6[%c0_14, %c0_15] : memref<16x384xbf16, #tpu.memory_space<vmem>>, vector<16x384xbf16>
      tpu.vector_store %arg6[%c0_14, %c0_15], %17 {strides = array<i32>} : memref<16x384xbf16, #tpu.memory_space<vmem>>, vector<16x384xbf16>,
    } else {
    }
    return
  }
  func.func @transform_0(%arg0: i32, %arg1: i32, %arg2: i32) -> (i32, i32) {
    %c0_i32 = arith.constant 0 : i32
    return %arg0, %arg2 : i32, i32
  }
  func.func @transform_1(%arg0: i32, %arg1: i32, %arg2: i32) -> (i32, i32) {
    %c0_i32 = arith.constant 0 : i32
    return %arg2, %arg1 : i32, i32
  }
  func.func @transform_2(%arg0: i32, %arg1: i32, %arg2: i32) -> (i32, i32) {
    %c0_i32 = arith.constant 0 : i32
    %c0_i32_0 = arith.constant 0 : i32
    return %c0_i32, %arg1 : i32, i32
  }
  func.func @transform_3(%arg0: i32, %arg1: i32, %arg2: i32) -> (i32, i32) {
    %c0_i32 = arith.constant 0 : i32
    return %arg0, %arg1 : i32, i32
  }
}

module attributes {stable_mosaic.version = 11 : i64} {
  func.func @_pe_kernel(%arg0: i32, %arg1: memref<2x8x32xf32, #tpu.memory_space<vmem>>, %arg2: memref<8x128xf32, #tpu.memory_space<vmem>>, %arg3: memref<2x8x128xf32, #tpu.memory_space<vmem>>) attributes {dimension_semantics = [#tpu.dimension_semantics<arbitrary>], iteration_bounds = array<i64: 1>, scalar_prefetch = 0 : i64, scratch_operands = 0 : i64, tpu.core_type = #tpu.core_type<tc>, window_params = [{pipeline_mode = #tpu.pipeline_mode<synchronous>, transform_indices = @transform_0, window_bounds = array<i64: 2, 8, 32>}, {pipeline_mode = #tpu.pipeline_mode<synchronous>, transform_indices = @transform_1, window_bounds = array<i64: 8, 128>}, {pipeline_mode = #tpu.pipeline_mode<synchronous>, transform_indices = @transform_2, window_bounds = array<i64: 2, 8, 128>}]} {
    %c0 = arith.constant 0 : index
    %c0_0 = arith.constant 0 : index
    %0 = vector.load %arg2[%c0, %c0_0] : memref<8x128xf32, #tpu.memory_space<vmem>>, vector<8x128xf32>
    %cst = arith.constant 0.000000e+00 : f32
    %1 = vector.broadcast %cst : f32 to vector<2x8x128xf32>
    %c0_1 = arith.constant 0 : index
    %c0_2 = arith.constant 0 : index
    %c0_3 = arith.constant 0 : index
    %2 = vector.load %arg3[%c0_1, %c0_2, %c0_3] : memref<2x8x128xf32, #tpu.memory_space<vmem>>, vector<2x8x128xf32>
    tpu.vector_store %arg3[%c0_1, %c0_2, %c0_3], %1 {strides = array<i32>} : memref<2x8x128xf32, #tpu.memory_space<vmem>>, vector<2x8x128xf32>,
    %c0_4 = arith.constant 0 : index
    %c0_5 = arith.constant 0 : index
    %c0_6 = arith.constant 0 : index
    %3 = vector.load %arg1[%c0_4, %c0_5, %c0_6] : memref<2x8x32xf32, #tpu.memory_space<vmem>>, vector<2x8x32xf32>
    %cst_7 = arith.constant 5.65685415 : f32
    %4 = vector.broadcast %cst_7 : f32 to vector<2x8x32xf32>
    %5 = arith.mulf %3, %4 : vector<2x8x32xf32>
    %6 = vector.extract_strided_slice %0 {offsets = [0, 0], sizes = [8, 32], strides = [1, 1]} : vector<8x128xf32> to vector<8x32xf32>
    %7 = vector.shape_cast %6 : vector<8x32xf32> to vector<1x8x32xf32>
    %8 = vector.broadcast %7 : vector<1x8x32xf32> to vector<2x8x32xf32>
    %9 = arith.addf %5, %8 : vector<2x8x32xf32>
    %c0_8 = arith.constant 0 : index
    %c0_9 = arith.constant 0 : index
    %c0_10 = arith.constant 0 : index
    %10 = vector.load %arg3[%c0_8, %c0_9, %c0_10] : memref<2x8x128xf32, #tpu.memory_space<vmem>>, vector<2x8x32xf32>
    tpu.vector_store %arg3[%c0_8, %c0_9, %c0_10], %9 {strides = array<i32>} : memref<2x8x128xf32, #tpu.memory_space<vmem>>, vector<2x8x32xf32>,
    return
  }
  func.func @transform_0(%arg0: i32) -> (i32, i32, i32) {
    %c0_i32 = arith.constant 0 : i32
    %c0_i32_0 = arith.constant 0 : i32
    %c0_i32_1 = arith.constant 0 : i32
    %c0_i32_2 = arith.constant 0 : i32
    return %c0_i32, %c0_i32_0, %c0_i32_1 : i32, i32, i32
  }
  func.func @transform_1(%arg0: i32) -> (i32, i32) {
    %c0_i32 = arith.constant 0 : i32
    %c0_i32_0 = arith.constant 0 : i32
    %c0_i32_1 = arith.constant 0 : i32
    return %c0_i32, %c0_i32_0 : i32, i32
  }
  func.func @transform_2(%arg0: i32) -> (i32, i32, i32) {
    %c0_i32 = arith.constant 0 : i32
    %c0_i32_0 = arith.constant 0 : i32
    %c0_i32_1 = arith.constant 0 : i32
    %c0_i32_2 = arith.constant 0 : i32
    return %c0_i32, %c0_i32_0, %c0_i32_1 : i32, i32, i32
  }
}

module attributes {stable_mosaic.version = 11 : i64} {
  func.func @_attention_kernel(%arg0: i32, %arg1: memref<1x8x384xbf16, #tpu.memory_space<vmem>>, %arg2: memref<1x8x128xbf16, #tpu.memory_space<vmem>>) attributes {dimension_semantics = [#tpu.dimension_semantics<parallel>], iteration_bounds = array<i64: 2>, scalar_prefetch = 0 : i64, scratch_operands = 0 : i64, tpu.core_type = #tpu.core_type<tc>, window_params = [{transform_indices = @transform_0, window_bounds = array<i64: 1, 8, 384>}, {transform_indices = @transform_1, window_bounds = array<i64: 1, 8, 128>}]} {
    %cst = arith.constant 0.000000e+00 : bf16
    %0 = vector.broadcast %cst : bf16 to vector<1x8x128xbf16>
    %c0 = arith.constant 0 : index
    %c0_0 = arith.constant 0 : index
    %c0_1 = arith.constant 0 : index
    %1 = vector.load %arg2[%c0, %c0_0, %c0_1] : memref<1x8x128xbf16, #tpu.memory_space<vmem>>, vector<1x8x128xbf16>
    tpu.vector_store %arg2[%c0, %c0_0, %c0_1], %0 {strides = array<i32>} : memref<1x8x128xbf16, #tpu.memory_space<vmem>>, vector<1x8x128xbf16>,
    %2 = tpu.iota {dimensions = array<i32: 0>} : vector<8x8xi32>
    %3 = tpu.iota {dimensions = array<i32: 1>} : vector<8x8xi32>
    %4 = arith.cmpi sle, %3, %2 : vector<8x8xi32>
    %c0_2 = arith.constant 0 : index
    %c0_3 = arith.constant 0 : index
    %c0_4 = arith.constant 0 : index
    %5 = vector.load %arg1[%c0_2, %c0_3, %c0_4] : memref<1x8x384xbf16, #tpu.memory_space<vmem>>, vector<1x8x8xbf16>
    %6 = vector.shape_cast %5 : vector<1x8x8xbf16> to vector<8x8xbf16>
    %c0_5 = arith.constant 0 : index
    %c0_6 = arith.constant 0 : index
    %c128 = arith.constant 128 : index
    %7 = vector.load %arg1[%c0_5, %c0_6, %c128] : memref<1x8x384xbf16, #tpu.memory_space<vmem>>, vector<1x8x8xbf16>
    %8 = vector.shape_cast %7 : vector<1x8x8xbf16> to vector<8x8xbf16>
    %c0_7 = arith.constant 0 : index
    %c0_8 = arith.constant 0 : index
    %c256 = arith.constant 256 : index
    %9 = vector.load %arg1[%c0_7, %c0_8, %c256] : memref<1x8x384xbf16, #tpu.memory_space<vmem>>, vector<1x8x8xbf16>
    %10 = vector.shape_cast %9 : vector<1x8x8xbf16> to vector<8x8xbf16>
    %cst_9 = arith.constant dense<0.000000e+00> : vector<8x8xf32>
    %11 = tpu.matmul %6, %8, %cst_9 {dimension_numbers = #tpu.dot_dimension_numbers<[1], [1], [0], [0], [0, 0, 1, 0], [], []>} : vector<8x8xbf16>, vector<8x8xbf16>, vector<8x8xf32> -> vector<8x8xf32>
    %cst_10 = arith.constant 0.353553385 : f32
    %12 = vector.broadcast %cst_10 : f32 to vector<8x8xf32>
    %13 = arith.mulf %11, %12 : vector<8x8xf32>
    %cst_11 = arith.constant 0xFF800000 : f32
    %14 = vector.broadcast %cst_11 : f32 to vector<8x8xf32>
    %15 = arith.select %4, %13, %14 : vector<8x8xi1>, vector<8x8xf32>
    %cst_12 = arith.constant dense<0xFF800000> : vector<8xf32>
    %16 = vector.multi_reduction <maximumf>, %15, %cst_12 [1] : vector<8x8xf32> to vector<8xf32>
    %17 = vector.shape_cast %16 : vector<8xf32> to vector<8x1xf32>
    %18 = vector.broadcast %17 : vector<8x1xf32> to vector<8x8xf32>
    %19 = arith.subf %15, %18 : vector<8x8xf32>
    %20 = math.exp %19 : vector<8x8xf32>
    %cst_13 = arith.constant dense<0.000000e+00> : vector<8xf32>
    %21 = vector.multi_reduction <add>, %20, %cst_13 [1] : vector<8x8xf32> to vector<8xf32>
    %22 = vector.shape_cast %21 : vector<8xf32> to vector<8x1xf32>
    %23 = tpu.reciprocal %22 {approx = true} : vector<8x1xf32> -> vector<8x1xf32>
    %24 = vector.broadcast %23 : vector<8x1xf32> to vector<8x8xf32>
    %25 = arith.mulf %20, %24 : vector<8x8xf32>
    %26 = arith.truncf %25 : vector<8x8xf32> to vector<8x8xbf16>
    %cst_14 = arith.constant dense<0.000000e+00> : vector<8x8xf32>
    %27 = tpu.matmul %26, %10, %cst_14 {dimension_numbers = #tpu.dot_dimension_numbers<[1], [0], [0], [1], [0, 0, 1, 1], [], []>} : vector<8x8xbf16>, vector<8x8xbf16>, vector<8x8xf32> -> vector<8x8xf32>
    %28 = arith.truncf %27 : vector<8x8xf32> to vector<8x8xbf16>
    %c0_15 = arith.constant 0 : index
    %c0_16 = arith.constant 0 : index
    %c0_17 = arith.constant 0 : index
    %29 = vector.load %arg2[%c0_15, %c0_16, %c0_17] : memref<1x8x128xbf16, #tpu.memory_space<vmem>>, vector<1x8x8xbf16>
    %30 = vector.shape_cast %29 : vector<1x8x8xbf16> to vector<8x8xbf16>
    %31 = vector.shape_cast %28 : vector<8x8xbf16> to vector<1x8x8xbf16>
    tpu.vector_store %arg2[%c0_15, %c0_16, %c0_17], %31 {strides = array<i32>} : memref<1x8x128xbf16, #tpu.memory_space<vmem>>, vector<1x8x8xbf16>,
    %c0_18 = arith.constant 0 : index
    %c0_19 = arith.constant 0 : index
    %c8 = arith.constant 8 : index
    %32 = vector.load %arg1[%c0_18, %c0_19, %c8] : memref<1x8x384xbf16, #tpu.memory_space<vmem>>, vector<1x8x8xbf16>
    %33 = vector.shape_cast %32 : vector<1x8x8xbf16> to vector<8x8xbf16>
    %c0_20 = arith.constant 0 : index
    %c0_21 = arith.constant 0 : index
    %c136 = arith.constant 136 : index
    %34 = vector.load %arg1[%c0_20, %c0_21, %c136] : memref<1x8x384xbf16, #tpu.memory_space<vmem>>, vector<1x8x8xbf16>
    %35 = vector.shape_cast %34 : vector<1x8x8xbf16> to vector<8x8xbf16>
    %c0_22 = arith.constant 0 : index
    %c0_23 = arith.constant 0 : index
    %c264 = arith.constant 264 : index
    %36 = vector.load %arg1[%c0_22, %c0_23, %c264] : memref<1x8x384xbf16, #tpu.memory_space<vmem>>, vector<1x8x8xbf16>
    %37 = vector.shape_cast %36 : vector<1x8x8xbf16> to vector<8x8xbf16>
    %cst_24 = arith.constant dense<0.000000e+00> : vector<8x8xf32>
    %38 = tpu.matmul %33, %35, %cst_24 {dimension_numbers = #tpu.dot_dimension_numbers<[1], [1], [0], [0], [0, 0, 1, 0], [], []>} : vector<8x8xbf16>, vector<8x8xbf16>, vector<8x8xf32> -> vector<8x8xf32>
    %cst_25 = arith.constant 0.353553385 : f32
    %39 = vector.broadcast %cst_25 : f32 to vector<8x8xf32>
    %40 = arith.mulf %38, %39 : vector<8x8xf32>
    %cst_26 = arith.constant 0xFF800000 : f32
    %41 = vector.broadcast %cst_26 : f32 to vector<8x8xf32>
    %42 = arith.select %4, %40, %41 : vector<8x8xi1>, vector<8x8xf32>
    %cst_27 = arith.constant dense<0xFF800000> : vector<8xf32>
    %43 = vector.multi_reduction <maximumf>, %42, %cst_27 [1] : vector<8x8xf32> to vector<8xf32>
    %44 = vector.shape_cast %43 : vector<8xf32> to vector<8x1xf32>
    %45 = vector.broadcast %44 : vector<8x1xf32> to vector<8x8xf32>
    %46 = arith.subf %42, %45 : vector<8x8xf32>
    %47 = math.exp %46 : vector<8x8xf32>
    %cst_28 = arith.constant dense<0.000000e+00> : vector<8xf32>
    %48 = vector.multi_reduction <add>, %47, %cst_28 [1] : vector<8x8xf32> to vector<8xf32>
    %49 = vector.shape_cast %48 : vector<8xf32> to vector<8x1xf32>
    %50 = tpu.reciprocal %49 {approx = true} : vector<8x1xf32> -> vector<8x1xf32>
    %51 = vector.broadcast %50 : vector<8x1xf32> to vector<8x8xf32>
    %52 = arith.mulf %47, %51 : vector<8x8xf32>
    %53 = arith.truncf %52 : vector<8x8xf32> to vector<8x8xbf16>
    %cst_29 = arith.constant dense<0.000000e+00> : vector<8x8xf32>
    %54 = tpu.matmul %53, %37, %cst_29 {dimension_numbers = #tpu.dot_dimension_numbers<[1], [0], [0], [1], [0, 0, 1, 1], [], []>} : vector<8x8xbf16>, vector<8x8xbf16>, vector<8x8xf32> -> vector<8x8xf32>
    %55 = arith.truncf %54 : vector<8x8xf32> to vector<8x8xbf16>
    %c0_30 = arith.constant 0 : index
    %c0_31 = arith.constant 0 : index
    %c8_32 = arith.constant 8 : index
    %56 = vector.load %arg2[%c0_30, %c0_31, %c8_32] : memref<1x8x128xbf16, #tpu.memory_space<vmem>>, vector<1x8x8xbf16>
    %57 = vector.shape_cast %56 : vector<1x8x8xbf16> to vector<8x8xbf16>
    %58 = vector.shape_cast %55 : vector<8x8xbf16> to vector<1x8x8xbf16>
    tpu.vector_store %arg2[%c0_30, %c0_31, %c8_32], %58 {strides = array<i32>} : memref<1x8x128xbf16, #tpu.memory_space<vmem>>, vector<1x8x8xbf16>,
    %c0_33 = arith.constant 0 : index
    %c0_34 = arith.constant 0 : index
    %c16 = arith.constant 16 : index
    %59 = vector.load %arg1[%c0_33, %c0_34, %c16] : memref<1x8x384xbf16, #tpu.memory_space<vmem>>, vector<1x8x8xbf16>
    %60 = vector.shape_cast %59 : vector<1x8x8xbf16> to vector<8x8xbf16>
    %c0_35 = arith.constant 0 : index
    %c0_36 = arith.constant 0 : index
    %c144 = arith.constant 144 : index
    %61 = vector.load %arg1[%c0_35, %c0_36, %c144] : memref<1x8x384xbf16, #tpu.memory_space<vmem>>, vector<1x8x8xbf16>
    %62 = vector.shape_cast %61 : vector<1x8x8xbf16> to vector<8x8xbf16>
    %c0_37 = arith.constant 0 : index
    %c0_38 = arith.constant 0 : index
    %c272 = arith.constant 272 : index
    %63 = vector.load %arg1[%c0_37, %c0_38, %c272] : memref<1x8x384xbf16, #tpu.memory_space<vmem>>, vector<1x8x8xbf16>
    %64 = vector.shape_cast %63 : vector<1x8x8xbf16> to vector<8x8xbf16>
    %cst_39 = arith.constant dense<0.000000e+00> : vector<8x8xf32>
    %65 = tpu.matmul %60, %62, %cst_39 {dimension_numbers = #tpu.dot_dimension_numbers<[1], [1], [0], [0], [0, 0, 1, 0], [], []>} : vector<8x8xbf16>, vector<8x8xbf16>, vector<8x8xf32> -> vector<8x8xf32>
    %cst_40 = arith.constant 0.353553385 : f32
    %66 = vector.broadcast %cst_40 : f32 to vector<8x8xf32>
    %67 = arith.mulf %65, %66 : vector<8x8xf32>
    %cst_41 = arith.constant 0xFF800000 : f32
    %68 = vector.broadcast %cst_41 : f32 to vector<8x8xf32>
    %69 = arith.select %4, %67, %68 : vector<8x8xi1>, vector<8x8xf32>
    %cst_42 = arith.constant dense<0xFF800000> : vector<8xf32>
    %70 = vector.multi_reduction <maximumf>, %69, %cst_42 [1] : vector<8x8xf32> to vector<8xf32>
    %71 = vector.shape_cast %70 : vector<8xf32> to vector<8x1xf32>
    %72 = vector.broadcast %71 : vector<8x1xf32> to vector<8x8xf32>
    %73 = arith.subf %69, %72 : vector<8x8xf32>
    %74 = math.exp %73 : vector<8x8xf32>
    %cst_43 = arith.constant dense<0.000000e+00> : vector<8xf32>
    %75 = vector.multi_reduction <add>, %74, %cst_43 [1] : vector<8x8xf32> to vector<8xf32>
    %76 = vector.shape_cast %75 : vector<8xf32> to vector<8x1xf32>
    %77 = tpu.reciprocal %76 {approx = true} : vector<8x1xf32> -> vector<8x1xf32>
    %78 = vector.broadcast %77 : vector<8x1xf32> to vector<8x8xf32>
    %79 = arith.mulf %74, %78 : vector<8x8xf32>
    %80 = arith.truncf %79 : vector<8x8xf32> to vector<8x8xbf16>
    %cst_44 = arith.constant dense<0.000000e+00> : vector<8x8xf32>
    %81 = tpu.matmul %80, %64, %cst_44 {dimension_numbers = #tpu.dot_dimension_numbers<[1], [0], [0], [1], [0, 0, 1, 1], [], []>} : vector<8x8xbf16>, vector<8x8xbf16>, vector<8x8xf32> -> vector<8x8xf32>
    %82 = arith.truncf %81 : vector<8x8xf32> to vector<8x8xbf16>
    %c0_45 = arith.constant 0 : index
    %c0_46 = arith.constant 0 : index
    %c16_47 = arith.constant 16 : index
    %83 = vector.load %arg2[%c0_45, %c0_46, %c16_47] : memref<1x8x128xbf16, #tpu.memory_space<vmem>>, vector<1x8x8xbf16>
    %84 = vector.shape_cast %83 : vector<1x8x8xbf16> to vector<8x8xbf16>
    %85 = vector.shape_cast %82 : vector<8x8xbf16> to vector<1x8x8xbf16>
    tpu.vector_store %arg2[%c0_45, %c0_46, %c16_47], %85 {strides = array<i32>} : memref<1x8x128xbf16, #tpu.memory_space<vmem>>, vector<1x8x8xbf16>,
    %c0_48 = arith.constant 0 : index
    %c0_49 = arith.constant 0 : index
    %c24 = arith.constant 24 : index
    %86 = vector.load %arg1[%c0_48, %c0_49, %c24] : memref<1x8x384xbf16, #tpu.memory_space<vmem>>, vector<1x8x8xbf16>
    %87 = vector.shape_cast %86 : vector<1x8x8xbf16> to vector<8x8xbf16>
    %c0_50 = arith.constant 0 : index
    %c0_51 = arith.constant 0 : index
    %c152 = arith.constant 152 : index
    %88 = vector.load %arg1[%c0_50, %c0_51, %c152] : memref<1x8x384xbf16, #tpu.memory_space<vmem>>, vector<1x8x8xbf16>
    %89 = vector.shape_cast %88 : vector<1x8x8xbf16> to vector<8x8xbf16>
    %c0_52 = arith.constant 0 : index
    %c0_53 = arith.constant 0 : index
    %c280 = arith.constant 280 : index
    %90 = vector.load %arg1[%c0_52, %c0_53, %c280] : memref<1x8x384xbf16, #tpu.memory_space<vmem>>, vector<1x8x8xbf16>
    %91 = vector.shape_cast %90 : vector<1x8x8xbf16> to vector<8x8xbf16>
    %cst_54 = arith.constant dense<0.000000e+00> : vector<8x8xf32>
    %92 = tpu.matmul %87, %89, %cst_54 {dimension_numbers = #tpu.dot_dimension_numbers<[1], [1], [0], [0], [0, 0, 1, 0], [], []>} : vector<8x8xbf16>, vector<8x8xbf16>, vector<8x8xf32> -> vector<8x8xf32>
    %cst_55 = arith.constant 0.353553385 : f32
    %93 = vector.broadcast %cst_55 : f32 to vector<8x8xf32>
    %94 = arith.mulf %92, %93 : vector<8x8xf32>
    %cst_56 = arith.constant 0xFF800000 : f32
    %95 = vector.broadcast %cst_56 : f32 to vector<8x8xf32>
    %96 = arith.select %4, %94, %95 : vector<8x8xi1>, vector<8x8xf32>
    %cst_57 = arith.constant dense<0xFF800000> : vector<8xf32>
    %97 = vector.multi_reduction <maximumf>, %96, %cst_57 [1] : vector<8x8xf32> to vector<8xf32>
    %98 = vector.shape_cast %97 : vector<8xf32> to vector<8x1xf32>
    %99 = vector.broadcast %98 : vector<8x1xf32> to vector<8x8xf32>
    %100 = arith.subf %96, %99 : vector<8x8xf32>
    %101 = math.exp %100 : vector<8x8xf32>
    %cst_58 = arith.constant dense<0.000000e+00> : vector<8xf32>
    %102 = vector.multi_reduction <add>, %101, %cst_58 [1] : vector<8x8xf32> to vector<8xf32>
    %103 = vector.shape_cast %102 : vector<8xf32> to vector<8x1xf32>
    %104 = tpu.reciprocal %103 {approx = true} : vector<8x1xf32> -> vector<8x1xf32>
    %105 = vector.broadcast %104 : vector<8x1xf32> to vector<8x8xf32>
    %106 = arith.mulf %101, %105 : vector<8x8xf32>
    %107 = arith.truncf %106 : vector<8x8xf32> to vector<8x8xbf16>
    %cst_59 = arith.constant dense<0.000000e+00> : vector<8x8xf32>
    %108 = tpu.matmul %107, %91, %cst_59 {dimension_numbers = #tpu.dot_dimension_numbers<[1], [0], [0], [1], [0, 0, 1, 1], [], []>} : vector<8x8xbf16>, vector<8x8xbf16>, vector<8x8xf32> -> vector<8x8xf32>
    %109 = arith.truncf %108 : vector<8x8xf32> to vector<8x8xbf16>
    %c0_60 = arith.constant 0 : index
    %c0_61 = arith.constant 0 : index
    %c24_62 = arith.constant 24 : index
    %110 = vector.load %arg2[%c0_60, %c0_61, %c24_62] : memref<1x8x128xbf16, #tpu.memory_space<vmem>>, vector<1x8x8xbf16>
    %111 = vector.shape_cast %110 : vector<1x8x8xbf16> to vector<8x8xbf16>
    %112 = vector.shape_cast %109 : vector<8x8xbf16> to vector<1x8x8xbf16>
    tpu.vector_store %arg2[%c0_60, %c0_61, %c24_62], %112 {strides = array<i32>} : memref<1x8x128xbf16, #tpu.memory_space<vmem>>, vector<1x8x8xbf16>,
    return
  }
  func.func @transform_0(%arg0: i32) -> (i32, i32, i32) {
    %c0_i32 = arith.constant 0 : i32
    %c0_i32_0 = arith.constant 0 : i32
    %c0_i32_1 = arith.constant 0 : i32
    return %arg0, %c0_i32, %c0_i32_0 : i32, i32, i32
  }
  func.func @transform_1(%arg0: i32) -> (i32, i32, i32) {
    %c0_i32 = arith.constant 0 : i32
    %c0_i32_0 = arith.constant 0 : i32
    %c0_i32_1 = arith.constant 0 : i32
    return %arg0, %c0_i32, %c0_i32_0 : i32, i32, i32
  }
}

module attributes {stable_mosaic.version = 11 : i64} {
  func.func @_linear_ln_kernel(%arg0: i32, %arg1: i32, %arg2: memref<16x128xbf16, #tpu.memory_space<vmem>>, %arg3: memref<128x128xbf16, #tpu.memory_space<vmem>>, %arg4: memref<1x128xf32, #tpu.memory_space<vmem>>, %arg5: memref<16x128xf32, #tpu.memory_space<vmem>>, %arg6: memref<1x128xf32, #tpu.memory_space<vmem>>, %arg7: memref<1x128xf32, #tpu.memory_space<vmem>>, %arg8: memref<16x128xf32, #tpu.memory_space<vmem>>, %arg9: memref<16x128xf32, #tpu.memory_space<vmem>>) attributes {dimension_semantics = [#tpu.dimension_semantics<parallel>, #tpu.dimension_semantics<arbitrary>], iteration_bounds = array<i64: 1, 1>, scalar_prefetch = 0 : i64, scratch_operands = 1 : i64, tpu.core_type = #tpu.core_type<tc>, window_params = [{transform_indices = @transform_0, window_bounds = array<i64: 16, 128>}, {transform_indices = @transform_1, window_bounds = array<i64: 128, 128>}, {pipeline_mode = #tpu.pipeline_mode<synchronous>, transform_indices = @transform_2, window_bounds = array<i64: 1, 128>}, {transform_indices = @transform_3, window_bounds = array<i64: 16, 128>}, {pipeline_mode = #tpu.pipeline_mode<synchronous>, transform_indices = @transform_4, window_bounds = array<i64: 1, 128>}, {pipeline_mode = #tpu.pipeline_mode<synchronous>, transform_indices = @transform_5, window_bounds = array<i64: 1, 128>}, {transform_indices = @transform_6, window_bounds = array<i64: 16, 128>}]} {
    %c0_i32 = arith.constant 0 : i32
    %0 = arith.cmpi eq, %arg1, %c0_i32 : i32
    %1 = arith.extui %0 : i1 to i32
    %c0_i32_0 = arith.constant 0 : i32
    %2 = arith.cmpi ne, %1, %c0_i32_0 : i32
    scf.if %2 {
      %cst_10 = arith.constant 0.000000e+00 : f32
      %12 = vector.broadcast %cst_10 : f32 to vector<16x128xf32>
      %c0_11 = arith.constant 0 : index
      %c0_12 = arith.constant 0 : index
      %13 = vector.load %arg9[%c0_11, %c0_12] : memref<16x128xf32, #tpu.memory_space<vmem>>, vector<16x128xf32>
      tpu.vector_store %arg9[%c0_11, %c0_12], %12 {strides = array<i32>} : memref<16x128xf32, #tpu.memory_space<vmem>>, vector<16x128xf32>,
    } else {
    }
    %c0 = arith.constant 0 : index
    %c0_1 = arith.constant 0 : index
    %3 = vector.load %arg9[%c0, %c0_1] : memref<16x128xf32, #tpu.memory_space<vmem>>, vector<16x128xf32>
    %c0_2 = arith.constant 0 : index
    %c0_3 = arith.constant 0 : index
    %4 = vector.load %arg2[%c0_2, %c0_3] : memref<16x128xbf16, #tpu.memory_space<vmem>>, vector<16x128xbf16>
    %c0_4 = arith.constant 0 : index
    %c0_5 = arith.constant 0 : index
    %5 = vector.load %arg3[%c0_4, %c0_5] : memref<128x128xbf16, #tpu.memory_space<vmem>>, vector<128x128xbf16>
    %cst = arith.constant dense<0.000000e+00> : vector<16x128xf32>
    %6 = tpu.matmul %4, %5, %cst {dimension_numbers = #tpu.dot_dimension_numbers<[1], [0], [0], [1], [0, 0, 1, 1], [], []>} : vector<16x128xbf16>, vector<128x128xbf16>, vector<16x128xf32> -> vector<16x128xf32>
    %7 = arith.addf %3, %6 : vector<16x128xf32>
    %c0_6 = arith.constant 0 : index
    %c0_7 = arith.constant 0 : index
    %8 = vector.load %arg9[%c0_6, %c0_7] : memref<16x128xf32, #tpu.memory_space<vmem>>, vector<16x128xf32>
    tpu.vector_store %arg9[%c0_6, %c0_7], %7 {strides = array<i32>} : memref<16x128xf32, #tpu.memory_space<vmem>>, vector<16x128xf32>,
    %c0_i32_8 = arith.constant 0 : i32
    %9 = arith.cmpi eq, %arg1, %c0_i32_8 : i32
    %10 = arith.extui %9 : i1 to i32
    %c0_i32_9 = arith.constant 0 : i32
    %11 = arith.cmpi ne, %10, %c0_i32_9 : i32
    scf.if %11 {
      %c0_10 = arith.constant 0 : index
      %c0_11 = arith.constant 0 : index
      %12 = vector.load %arg9[%c0_10, %c0_11] : memref<16x128xf32, #tpu.memory_space<vmem>>, vector<16x128xf32>
      %c0_12 = arith.constant 0 : index
      %c0_13 = arith.constant 0 : index
      %13 = vector.load %arg4[%c0_12, %c0_13] : memref<1x128xf32, #tpu.memory_space<vmem>>, vector<1x128xf32>
      %14 = vector.broadcast %13 : vector<1x128xf32> to vector<16x128xf32>
      %15 = arith.addf %12, %14 : vector<16x128xf32>
      %c0_14 = arith.constant 0 : index
      %c0_15 = arith.constant 0 : index
      %16 = vector.load %arg5[%c0_14, %c0_15] : memref<16x128xf32, #tpu.memory_space<vmem>>, vector<16x128xf32>
      %17 = arith.addf %15, %16 : vector<16x128xf32>
      %cst_16 = arith.constant dense<0.000000e+00> : vector<16xf32>
      %18 = vector.multi_reduction <add>, %17, %cst_16 [1] : vector<16x128xf32> to vector<16xf32>
      %19 = vector.shape_cast %18 : vector<16xf32> to vector<16x1xf32>
      %cst_17 = arith.constant 3.125000e-02 : f32
      %20 = vector.broadcast %cst_17 : f32 to vector<16x1xf32>
      %21 = arith.mulf %19, %20 : vector<16x1xf32>
      %22 = tpu.iota {dimensions = array<i32: 1>} : vector<16x128xi32>
      %c32_i32 = arith.constant 32 : i32
      %23 = vector.broadcast %c32_i32 : i32 to vector<16x128xi32>
      %24 = arith.cmpi slt, %22, %23 : vector<16x128xi32>
      %25 = vector.broadcast %21 : vector<16x1xf32> to vector<16x128xf32>
      %26 = arith.subf %17, %25 : vector<16x128xf32>
      %cst_18 = arith.constant 0.000000e+00 : f32
      %27 = vector.broadcast %cst_18 : f32 to vector<16x128xf32>
      %28 = arith.select %24, %26, %27 : vector<16x128xi1>, vector<16x128xf32>
      %29 = arith.mulf %28, %28 : vector<16x128xf32>
      %cst_19 = arith.constant dense<0.000000e+00> : vector<16xf32>
      %30 = vector.multi_reduction <add>, %29, %cst_19 [1] : vector<16x128xf32> to vector<16xf32>
      %31 = vector.shape_cast %30 : vector<16xf32> to vector<16x1xf32>
      %cst_20 = arith.constant 3.125000e-02 : f32
      %32 = vector.broadcast %cst_20 : f32 to vector<16x1xf32>
      %33 = arith.mulf %31, %32 : vector<16x1xf32>
      %cst_21 = arith.constant 9.99999974E-6 : f32
      %34 = vector.broadcast %cst_21 : f32 to vector<16x1xf32>
      %35 = arith.addf %33, %34 : vector<16x1xf32>
      %36 = math.rsqrt %35 : vector<16x1xf32>
      %37 = vector.broadcast %36 : vector<16x1xf32> to vector<16x128xf32>
      %38 = arith.mulf %28, %37 : vector<16x128xf32>
      %c0_22 = arith.constant 0 : index
      %c0_23 = arith.constant 0 : index
      %39 = vector.load %arg6[%c0_22, %c0_23] : memref<1x128xf32, #tpu.memory_space<vmem>>, vector<1x128xf32>
      %40 = vector.broadcast %39 : vector<1x128xf32> to vector<16x128xf32>
      %41 = arith.mulf %38, %40 : vector<16x128xf32>
      %c0_24 = arith.constant 0 : index
      %c0_25 = arith.constant 0 : index
      %42 = vector.load %arg7[%c0_24, %c0_25] : memref<1x128xf32, #tpu.memory_space<vmem>>, vector<1x128xf32>
      %43 = vector.broadcast %42 : vector<1x128xf32> to vector<16x128xf32>
      %44 = arith.addf %41, %43 : vector<16x128xf32>
      %c0_26 = arith.constant 0 : index
      %c0_27 = arith.constant 0 : index
      %45 = vector.load %arg8[%c0_26, %c0_27] : memref<16x128xf32, #tpu.memory_space<vmem>>, vector<16x128xf32>
      tpu.vector_store %arg8[%c0_26, %c0_27], %44 {strides = array<i32>} : memref<16x128xf32, #tpu.memory_space<vmem>>, vector<16x128xf32>,
    } else {
    }
    return
  }
  func.func @transform_0(%arg0: i32, %arg1: i32) -> (i32, i32) {
    %c0_i32 = arith.constant 0 : i32
    return %arg0, %arg1 : i32, i32
  }
  func.func @transform_1(%arg0: i32, %arg1: i32) -> (i32, i32) {
    %c0_i32 = arith.constant 0 : i32
    %c0_i32_0 = arith.constant 0 : i32
    return %arg1, %c0_i32 : i32, i32
  }
  func.func @transform_2(%arg0: i32, %arg1: i32) -> (i32, i32) {
    %c0_i32 = arith.constant 0 : i32
    %c0_i32_0 = arith.constant 0 : i32
    %c0_i32_1 = arith.constant 0 : i32
    return %c0_i32, %c0_i32_0 : i32, i32
  }
  func.func @transform_3(%arg0: i32, %arg1: i32) -> (i32, i32) {
    %c0_i32 = arith.constant 0 : i32
    %c0_i32_0 = arith.constant 0 : i32
    return %arg0, %c0_i32 : i32, i32
  }
  func.func @transform_4(%arg0: i32, %arg1: i32) -> (i32, i32) {
    %c0_i32 = arith.constant 0 : i32
    %c0_i32_0 = arith.constant 0 : i32
    %c0_i32_1 = arith.constant 0 : i32
    return %c0_i32, %c0_i32_0 : i32, i32
  }
  func.func @transform_5(%arg0: i32, %arg1: i32) -> (i32, i32) {
    %c0_i32 = arith.constant 0 : i32
    %c0_i32_0 = arith.constant 0 : i32
    %c0_i32_1 = arith.constant 0 : i32
    return %c0_i32, %c0_i32_0 : i32, i32
  }
  func.func @transform_6(%arg0: i32, %arg1: i32) -> (i32, i32) {
    %c0_i32 = arith.constant 0 : i32
    %c0_i32_0 = arith.constant 0 : i32
    return %arg0, %c0_i32 : i32, i32
  }
}

module attributes {stable_mosaic.version = 11 : i64} {
  func.func @_linear_kernel(%arg0: i32, %arg1: i32, %arg2: i32, %arg3: memref<16x128xf32, #tpu.memory_space<vmem>>, %arg4: memref<128x128xbf16, #tpu.memory_space<vmem>>, %arg5: memref<1x128xf32, #tpu.memory_space<vmem>>, %arg6: memref<16x128xbf16, #tpu.memory_space<vmem>>, %arg7: memref<16x128xf32, #tpu.memory_space<vmem>>) attributes {dimension_semantics = [#tpu.dimension_semantics<parallel>, #tpu.dimension_semantics<parallel>, #tpu.dimension_semantics<arbitrary>], iteration_bounds = array<i64: 1, 1, 1>, scalar_prefetch = 0 : i64, scratch_operands = 1 : i64, tpu.core_type = #tpu.core_type<tc>, window_params = [{transform_indices = @transform_0, window_bounds = array<i64: 16, 128>}, {transform_indices = @transform_1, window_bounds = array<i64: 128, 128>}, {transform_indices = @transform_2, window_bounds = array<i64: 1, 128>}, {transform_indices = @transform_3, window_bounds = array<i64: 16, 128>}]} {
    %c0_i32 = arith.constant 0 : i32
    %0 = arith.cmpi eq, %arg2, %c0_i32 : i32
    %1 = arith.extui %0 : i1 to i32
    %c0_i32_0 = arith.constant 0 : i32
    %2 = arith.cmpi ne, %1, %c0_i32_0 : i32
    scf.if %2 {
      %cst_10 = arith.constant 0.000000e+00 : f32
      %13 = vector.broadcast %cst_10 : f32 to vector<16x128xf32>
      %c0_11 = arith.constant 0 : index
      %c0_12 = arith.constant 0 : index
      %14 = vector.load %arg7[%c0_11, %c0_12] : memref<16x128xf32, #tpu.memory_space<vmem>>, vector<16x128xf32>
      tpu.vector_store %arg7[%c0_11, %c0_12], %13 {strides = array<i32>} : memref<16x128xf32, #tpu.memory_space<vmem>>, vector<16x128xf32>,
    } else {
    }
    %c0 = arith.constant 0 : index
    %c0_1 = arith.constant 0 : index
    %3 = vector.load %arg7[%c0, %c0_1] : memref<16x128xf32, #tpu.memory_space<vmem>>, vector<16x128xf32>
    %c0_2 = arith.constant 0 : index
    %c0_3 = arith.constant 0 : index
    %4 = vector.load %arg3[%c0_2, %c0_3] : memref<16x128xf32, #tpu.memory_space<vmem>>, vector<16x128xf32>
    %5 = arith.truncf %4 : vector<16x128xf32> to vector<16x128xbf16>
    %c0_4 = arith.constant 0 : index
    %c0_5 = arith.constant 0 : index
    %6 = vector.load %arg4[%c0_4, %c0_5] : memref<128x128xbf16, #tpu.memory_space<vmem>>, vector<128x128xbf16>
    %cst = arith.constant dense<0.000000e+00> : vector<16x128xf32>
    %7 = tpu.matmul %5, %6, %cst {dimension_numbers = #tpu.dot_dimension_numbers<[1], [0], [0], [1], [0, 0, 1, 1], [], []>} : vector<16x128xbf16>, vector<128x128xbf16>, vector<16x128xf32> -> vector<16x128xf32>
    %8 = arith.addf %3, %7 : vector<16x128xf32>
    %c0_6 = arith.constant 0 : index
    %c0_7 = arith.constant 0 : index
    %9 = vector.load %arg7[%c0_6, %c0_7] : memref<16x128xf32, #tpu.memory_space<vmem>>, vector<16x128xf32>
    tpu.vector_store %arg7[%c0_6, %c0_7], %8 {strides = array<i32>} : memref<16x128xf32, #tpu.memory_space<vmem>>, vector<16x128xf32>,
    %c0_i32_8 = arith.constant 0 : i32
    %10 = arith.cmpi eq, %arg2, %c0_i32_8 : i32
    %11 = arith.extui %10 : i1 to i32
    %c0_i32_9 = arith.constant 0 : i32
    %12 = arith.cmpi ne, %11, %c0_i32_9 : i32
    scf.if %12 {
      %c0_10 = arith.constant 0 : index
      %c0_11 = arith.constant 0 : index
      %13 = vector.load %arg7[%c0_10, %c0_11] : memref<16x128xf32, #tpu.memory_space<vmem>>, vector<16x128xf32>
      %c0_12 = arith.constant 0 : index
      %c0_13 = arith.constant 0 : index
      %14 = vector.load %arg5[%c0_12, %c0_13] : memref<1x128xf32, #tpu.memory_space<vmem>>, vector<1x128xf32>
      %15 = vector.broadcast %14 : vector<1x128xf32> to vector<16x128xf32>
      %16 = arith.addf %13, %15 : vector<16x128xf32>
      %cst_14 = arith.constant 0.000000e+00 : f32
      %17 = vector.broadcast %cst_14 : f32 to vector<16x128xf32>
      %18 = arith.maximumf %16, %17 : vector<16x128xf32>
      %19 = arith.truncf %18 : vector<16x128xf32> to vector<16x128xbf16>
      %c0_15 = arith.constant 0 : index
      %c0_16 = arith.constant 0 : index
      %20 = vector.load %arg6[%c0_15, %c0_16] : memref<16x128xbf16, #tpu.memory_space<vmem>>, vector<16x128xbf16>
      tpu.vector_store %arg6[%c0_15, %c0_16], %19 {strides = array<i32>} : memref<16x128xbf16, #tpu.memory_space<vmem>>, vector<16x128xbf16>,
    } else {
    }
    return
  }
  func.func @transform_0(%arg0: i32, %arg1: i32, %arg2: i32) -> (i32, i32) {
    %c0_i32 = arith.constant 0 : i32
    return %arg0, %arg2 : i32, i32
  }
  func.func @transform_1(%arg0: i32, %arg1: i32, %arg2: i32) -> (i32, i32) {
    %c0_i32 = arith.constant 0 : i32
    return %arg2, %arg1 : i32, i32
  }
  func.func @transform_2(%arg0: i32, %arg1: i32, %arg2: i32) -> (i32, i32) {
    %c0_i32 = arith.constant 0 : i32
    %c0_i32_0 = arith.constant 0 : i32
    return %c0_i32, %arg1 : i32, i32
  }
  func.func @transform_3(%arg0: i32, %arg1: i32, %arg2: i32) -> (i32, i32) {
    %c0_i32 = arith.constant 0 : i32
    return %arg0, %arg1 : i32, i32
  }
}

module attributes {stable_mosaic.version = 11 : i64} {
  func.func @_linear_kernel(%arg0: i32, %arg1: i32, %arg2: i32, %arg3: memref<16x128xf32, #tpu.memory_space<vmem>>, %arg4: memref<128x384xbf16, #tpu.memory_space<vmem>>, %arg5: memref<1x384xf32, #tpu.memory_space<vmem>>, %arg6: memref<16x384xbf16, #tpu.memory_space<vmem>>, %arg7: memref<16x384xf32, #tpu.memory_space<vmem>>) attributes {dimension_semantics = [#tpu.dimension_semantics<parallel>, #tpu.dimension_semantics<parallel>, #tpu.dimension_semantics<arbitrary>], iteration_bounds = array<i64: 1, 1, 1>, scalar_prefetch = 0 : i64, scratch_operands = 1 : i64, tpu.core_type = #tpu.core_type<tc>, window_params = [{transform_indices = @transform_0, window_bounds = array<i64: 16, 128>}, {transform_indices = @transform_1, window_bounds = array<i64: 128, 384>}, {transform_indices = @transform_2, window_bounds = array<i64: 1, 384>}, {transform_indices = @transform_3, window_bounds = array<i64: 16, 384>}]} {
    %c0_i32 = arith.constant 0 : i32
    %0 = arith.cmpi eq, %arg2, %c0_i32 : i32
    %1 = arith.extui %0 : i1 to i32
    %c0_i32_0 = arith.constant 0 : i32
    %2 = arith.cmpi ne, %1, %c0_i32_0 : i32
    scf.if %2 {
      %cst_10 = arith.constant 0.000000e+00 : f32
      %13 = vector.broadcast %cst_10 : f32 to vector<16x384xf32>
      %c0_11 = arith.constant 0 : index
      %c0_12 = arith.constant 0 : index
      %14 = vector.load %arg7[%c0_11, %c0_12] : memref<16x384xf32, #tpu.memory_space<vmem>>, vector<16x384xf32>
      tpu.vector_store %arg7[%c0_11, %c0_12], %13 {strides = array<i32>} : memref<16x384xf32, #tpu.memory_space<vmem>>, vector<16x384xf32>,
    } else {
    }
    %c0 = arith.constant 0 : index
    %c0_1 = arith.constant 0 : index
    %3 = vector.load %arg7[%c0, %c0_1] : memref<16x384xf32, #tpu.memory_space<vmem>>, vector<16x384xf32>
    %c0_2 = arith.constant 0 : index
    %c0_3 = arith.constant 0 : index
    %4 = vector.load %arg3[%c0_2, %c0_3] : memref<16x128xf32, #tpu.memory_space<vmem>>, vector<16x128xf32>
    %5 = arith.truncf %4 : vector<16x128xf32> to vector<16x128xbf16>
    %c0_4 = arith.constant 0 : index
    %c0_5 = arith.constant 0 : index
    %6 = vector.load %arg4[%c0_4, %c0_5] : memref<128x384xbf16, #tpu.memory_space<vmem>>, vector<128x384xbf16>
    %cst = arith.constant dense<0.000000e+00> : vector<16x384xf32>
    %7 = tpu.matmul %5, %6, %cst {dimension_numbers = #tpu.dot_dimension_numbers<[1], [0], [0], [1], [0, 0, 1, 1], [], []>} : vector<16x128xbf16>, vector<128x384xbf16>, vector<16x384xf32> -> vector<16x384xf32>
    %8 = arith.addf %3, %7 : vector<16x384xf32>
    %c0_6 = arith.constant 0 : index
    %c0_7 = arith.constant 0 : index
    %9 = vector.load %arg7[%c0_6, %c0_7] : memref<16x384xf32, #tpu.memory_space<vmem>>, vector<16x384xf32>
    tpu.vector_store %arg7[%c0_6, %c0_7], %8 {strides = array<i32>} : memref<16x384xf32, #tpu.memory_space<vmem>>, vector<16x384xf32>,
    %c0_i32_8 = arith.constant 0 : i32
    %10 = arith.cmpi eq, %arg2, %c0_i32_8 : i32
    %11 = arith.extui %10 : i1 to i32
    %c0_i32_9 = arith.constant 0 : i32
    %12 = arith.cmpi ne, %11, %c0_i32_9 : i32
    scf.if %12 {
      %c0_10 = arith.constant 0 : index
      %c0_11 = arith.constant 0 : index
      %13 = vector.load %arg7[%c0_10, %c0_11] : memref<16x384xf32, #tpu.memory_space<vmem>>, vector<16x384xf32>
      %c0_12 = arith.constant 0 : index
      %c0_13 = arith.constant 0 : index
      %14 = vector.load %arg5[%c0_12, %c0_13] : memref<1x384xf32, #tpu.memory_space<vmem>>, vector<1x384xf32>
      %15 = vector.broadcast %14 : vector<1x384xf32> to vector<16x384xf32>
      %16 = arith.addf %13, %15 : vector<16x384xf32>
      %17 = arith.truncf %16 : vector<16x384xf32> to vector<16x384xbf16>
      %c0_14 = arith.constant 0 : index
      %c0_15 = arith.constant 0 : index
      %18 = vector.load %arg6[%c0_14, %c0_15] : memref<16x384xbf16, #tpu.memory_space<vmem>>, vector<16x384xbf16>
      tpu.vector_store %arg6[%c0_14, %c0_15], %17 {strides = array<i32>} : memref<16x384xbf16, #tpu.memory_space<vmem>>, vector<16x384xbf16>,
    } else {
    }
    return
  }
  func.func @transform_0(%arg0: i32, %arg1: i32, %arg2: i32) -> (i32, i32) {
    %c0_i32 = arith.constant 0 : i32
    return %arg0, %arg2 : i32, i32
  }
  func.func @transform_1(%arg0: i32, %arg1: i32, %arg2: i32) -> (i32, i32) {
    %c0_i32 = arith.constant 0 : i32
    return %arg2, %arg1 : i32, i32
  }
  func.func @transform_2(%arg0: i32, %arg1: i32, %arg2: i32) -> (i32, i32) {
    %c0_i32 = arith.constant 0 : i32
    %c0_i32_0 = arith.constant 0 : i32
    return %c0_i32, %arg1 : i32, i32
  }
  func.func @transform_3(%arg0: i32, %arg1: i32, %arg2: i32) -> (i32, i32) {
    %c0_i32 = arith.constant 0 : i32
    return %arg0, %arg1 : i32, i32
  }
}

</mosaic_0001>

<llo_original>
// kernel: te_model_forward.11
$region0: #{te_model_forward.11}
  #allocation0 [shape = 'u32[]', space=smem, size = 0x4, offset = 0x4, fixed_abs, tag = 'smem constant byte address 0x4 - core index']
  #allocation1 [shape = 'u32[144,128]{1,0:T(1,128)}', space=vmem, size = 0x12000, scoped, tag = 'internal scratch']
  %s0 = inlined_call_operand.vmem [shape: f32[2,8,32], index: 0, kind: input, shape index: {}]
  %s1 = inlined_call_operand.vmem [shape: f32[8,128], index: 1, kind: input, shape index: {}]
  %s2 = inlined_call_operand.vmem [shape: f32[2,8,128], index: 2, kind: output, shape index: {}]
  %s3 = sld [smem:[#allocation0]]
  $region18: #{te_model_forward.11} parent=0
    _
  %s5 = ssub.s32 1, %s3
  %s6 = scalar_select 0, %s5, %s3
  // Predicated region
  $region2: #{te_model_forward.11} parent=0 // pred_check
    _
  $region3: #{te_model_forward.11} parent=0 // pred_check_branch
    %8 = sbr.rel (0) target = $region5
  $region4: #{te_model_forward.11} parent=0 // pred_region
    _
  $region5: #{te_model_forward.11} parent=0 // pred_fallthru
    _
  // Predicated region
  $region6: #{te_model_forward.11} parent=0 // pred_check
    _
  $region7: #{te_model_forward.11} parent=0 // pred_check_branch
    %10 = sbr.rel (0) target = $region9
  $region8: #{te_model_forward.11} parent=0 // pred_region
    _
  $region9: #{te_model_forward.11} parent=0 // pred_fallthru
    _
  %v11 = vld [vmem:[%s1] sm:$0xff]
  %12 = vst [vmem:[%s2] sm:$0xff] 0.0
  %13 = vst [vmem:[%s2 + $0x8] sm:$0xff] 0.0
  %v14 = vld [vmem:[%s0] sm:$0xff]
  %v15 = vld [vmem:[%s0 + $0x8] sm:$0xff]
  %v16 = vmul.f32 %v14, 5.656854
  %v17 = vmul.f32 %v15, 5.656854
  %v18 = vadd.f32 %v16, %v11
  %v19 = vadd.f32 %v17, %v11
  %vm20 = vcmask 261120
  %21 = vst.msk [vmem:[%s2] sm:$0xff] %vm20, %v18
  %22 = vst.msk [vmem:[%s2 + $0x8] sm:$0xff] %vm20, %v19
  // Predicated region
  $region10: #{te_model_forward.11} parent=0 // pred_check
    _
  $region11: #{te_model_forward.11} parent=0 // pred_check_branch
    %24 = sbr.rel (0) target = $region13
  $region12: #{te_model_forward.11} parent=0 // pred_region
    _
  $region13: #{te_model_forward.11} parent=0 // pred_fallthru
    _
  // Predicated region
  $region14: #{te_model_forward.11} parent=0 // pred_check
    _
  $region15: #{te_model_forward.11} parent=0 // pred_check_branch
    %26 = sbr.rel (0) target = $region17
  $region16: #{te_model_forward.11} parent=0 // pred_region
    _
  $region17: #{te_model_forward.11} parent=0 // pred_fallthru
    _

// kernel: te_model_forward.12
$region0: #{te_model_forward.12}
  #allocation0 [shape = 'u32[]', space=smem, size = 0x4, offset = 0x4, fixed_abs, tag = 'smem constant byte address 0x4 - core index']
  #allocation1 [shape = 'u32[144,128]{1,0:T(1,128)}', space=vmem, size = 0x12000, scoped, tag = 'internal scratch']
  #allocation2 [shape = 'f32[16,384]{1,0:T(8,128)}', space=vmem, size = 0x6000, scoped, tag = 'scratch operand']
  %s0 = inlined_call_operand.vmem [shape: f32[16,128], index: 0, kind: input, shape index: {}]
  %s1 = inlined_call_operand.hbm [shape: bf16[128,384], index: 1, kind: input, shape index: {}]
  %s2 = inlined_call_operand.vmem [shape: f32[1,384], index: 2, kind: input, shape index: {}]
  %s3 = inlined_call_operand.vmem [shape: bf16[16,384], index: 3, kind: output, shape index: {}]
  %s4 = sld [smem:[#allocation0]]
  $region34: #{te_model_forward.12} parent=0
    _
  %s6 = ssub.s32 1, %s4
  %s7 = scalar_select 0, %s6, %s4
  $region1: #{te_model_forward.12} parent=0
    #allocation3 [shape = 'u8[98304]{0}', space=vmem, size = 0x18000, scoped, tag = 'input window, operand 1, single buffered']
    #allocation4 [shape = 's32[1]{0}', space=sflag, size = 0x4, scoped, tag = 'scoped memory for te_model_forward.12']
    %8 = vsyncpa [#allocation4], 0
    // Predicated region
    $region2: #{te_model_forward.12} parent=1 // pred_check
      _
    $region3: #{te_model_forward.12} parent=1 // pred_check_branch
      %10 = sbr.rel (0) target = $region5
    $region4: #{te_model_forward.12} parent=1 // pred_region
      _
    $region5: #{te_model_forward.12} parent=1 // pred_fallthru
      _
    // Predicated region
    $region6: #{te_model_forward.12} parent=1 // pred_check
      _
    $region7: #{te_model_forward.12} parent=1 // pred_check_branch
      %12 = sbr.rel (0) target = $region9
    $region8: #{te_model_forward.12} parent=1 // pred_region
      %s14 = ssub.s32 3072, 3072
      %15 = vsyncadd [#allocation4], %s14
      %s16 = sshll.u32 [#allocation3], 4
      %s17 = int_to_ptr.vmem [resolvable:$true] %s16
      %22 = dma.hbm_to_vmem [thread:$0]  %s1, 3072, %s17, [#allocation4], 192, 192, 12
    $region9: #{te_model_forward.12} parent=1 // pred_fallthru
      _
    // Predicated region
    $region10: #{te_model_forward.12} parent=1 // pred_check
      _
    $region11: #{te_model_forward.12} parent=1 // pred_check_branch
      %24 = sbr.rel (0) target = $region13
    $region12: #{te_model_forward.12} parent=1 // pred_region
      _
    $region13: #{te_model_forward.12} parent=1 // pred_fallthru
      _
    // Predicated region
    $region14: #{te_model_forward.12} parent=1 // pred_check
      _
    $region15: #{te_model_forward.12} parent=1 // pred_check_branch
      %26 = sbr.rel (0) target = $region17
    $region16: #{te_model_forward.12} parent=1 // pred_region
      %27 = dma.done [#allocation4], 3072
    $region17: #{te_model_forward.12} parent=1 // pred_fallthru
      _
    %p29 = scmp.eq.s32.totalorder 0, 0
    // Predicated region
    $region18: #{te_model_forward.12} parent=1 // pred_check
      %p30 = pneg %p29
    $region19: #{te_model_forward.12} parent=1 // pred_check_branch
      %32 = sbr.rel (%p30) target = $region21
    $region20: #{te_model_forward.12} parent=1 // pred_region
      %33 = vst [vmem:[#allocation2] sm:$0xff] 0.0
      %34 = vst [vmem:[#allocation2 + $0x8] sm:$0xff] 0.0
      %35 = vst [vmem:[#allocation2 + $0x10] sm:$0xff] 0.0
      %36 = vst [vmem:[#allocation2 + $0x18] sm:$0xff] 0.0
      %37 = vst [vmem:[#allocation2 + $0x20] sm:$0xff] 0.0
      %38 = vst [vmem:[#allocation2 + $0x28] sm:$0xff] 0.0
    $region21: #{te_model_forward.12} parent=1 // pred_fallthru
      _
    %v39 = vld [vmem:[#allocation2] sm:$0xff]
    %v40 = vld [vmem:[#allocation2 + $0x8] sm:$0xff]
    %v41 = vld [vmem:[#allocation2 + $0x10] sm:$0xff]
    %v42 = vld [vmem:[#allocation2 + $0x18] sm:$0xff]
    %v43 = vld [vmem:[#allocation2 + $0x20] sm:$0xff]
    %v44 = vld [vmem:[#allocation2 + $0x28] sm:$0xff]
    %v45 = vld [vmem:[%s0] sm:$0xff]
    %v46 = vld [vmem:[%s0 + $0x8] sm:$0xff]
    %v47 = vpack.c.bf16 %v46, %v45
    %v48 = vld [vmem:[#allocation3] sm:$0xff]
    %v49 = vld [vmem:[#allocation3 + $0x8] sm:$0xf]
    %v50 = vld [vmem:[#allocation3 + $0xc] sm:$0xff]
    %v51 = vld [vmem:[#allocation3 + $0x14] sm:$0xf]
    %v52 = vld [vmem:[#allocation3 + $0x18] sm:$0xff]
    %v53 = vld [vmem:[#allocation3 + $0x20] sm:$0xf]
    %v54 = vld [vmem:[#allocation3 + $0x24] sm:$0xff]
    %v55 = vld [vmem:[#allocation3 + $0x2c] sm:$0xf]
    %v56 = vld [vmem:[#allocation3 + $0x30] sm:$0xff]
    %v57 = vld [vmem:[#allocation3 + $0x38] sm:$0xf]
    %v58 = vld [vmem:[#allocation3 + $0x3c] sm:$0xff]
    %v59 = vld [vmem:[#allocation3 + $0x44] sm:$0xf]
    %v60 = vld [vmem:[#allocation3 + $0x48] sm:$0xff]
    %v61 = vld [vmem:[#allocation3 + $0x50] sm:$0xf]
    %v62 = vld [vmem:[#allocation3 + $0x54] sm:$0xff]
    %v63 = vld [vmem:[#allocation3 + $0x5c] sm:$0xf]
    %v64 = vld [vmem:[#allocation3 + $0x60] sm:$0xff]
    %v65 = vld [vmem:[#allocation3 + $0x68] sm:$0xf]
    %v66 = vld [vmem:[#allocation3 + $0x6c] sm:$0xff]
    %v67 = vld [vmem:[#allocation3 + $0x74] sm:$0xf]
    %v68 = vld [vmem:[#allocation3 + $0x78] sm:$0xff]
    %v69 = vld [vmem:[#allocation3 + $0x80] sm:$0xf]
    %v70 = vld [vmem:[#allocation3 + $0x84] sm:$0xff]
    %v71 = vld [vmem:[#allocation3 + $0x8c] sm:$0xf]
    %v72 = vld [vmem:[#allocation3 + $0x90] sm:$0xff]
    %v73 = vld [vmem:[#allocation3 + $0x98] sm:$0xf]
    %v74 = vld [vmem:[#allocation3 + $0x9c] sm:$0xff]
    %v75 = vld [vmem:[#allocation3 + $0xa4] sm:$0xf]
    %v76 = vld [vmem:[#allocation3 + $0xa8] sm:$0xff]
    %v77 = vld [vmem:[#allocation3 + $0xb0] sm:$0xf]
    %v78 = vld [vmem:[#allocation3 + $0xb4] sm:$0xff]
    %v79 = vld [vmem:[#allocation3 + $0xbc] sm:$0xf]
    %v112 = vunpack.c.l.b16 %v48
    %v113 = vunpack.c.h.b16 %v48
    %v114 = vunpack.c.l.b16 %v49
    %v115 = vunpack.c.l.b16 %v50
    %v116 = vunpack.c.h.b16 %v50
    %v117 = vunpack.c.l.b16 %v51
    %v118 = vunpack.c.l.b16 %v52
    %v119 = vunpack.c.h.b16 %v52
    %v120 = vunpack.c.l.b16 %v53
    %v121 = vunpack.c.l.b16 %v54
    %v122 = vunpack.c.h.b16 %v54
    %v123 = vunpack.c.l.b16 %v55
    %v124 = vunpack.c.l.b16 %v56
    %v125 = vunpack.c.h.b16 %v56
    %v126 = vunpack.c.l.b16 %v57
    %v127 = vunpack.c.l.b16 %v58
    %v128 = vunpack.c.h.b16 %v58
    %v129 = vunpack.c.l.b16 %v59
    %v130 = vunpack.c.l.b16 %v60
    %v131 = vunpack.c.h.b16 %v60
    %v132 = vunpack.c.l.b16 %v61
    %v133 = vunpack.c.l.b16 %v62
    %v134 = vunpack.c.h.b16 %v62
    %v135 = vunpack.c.l.b16 %v63
    %v136 = vunpack.c.l.b16 %v64
    %v137 = vunpack.c.h.b16 %v64
    %v138 = vunpack.c.l.b16 %v65
    %v139 = vunpack.c.l.b16 %v66
    %v140 = vunpack.c.h.b16 %v66
    %v141 = vunpack.c.l.b16 %v67
    %v142 = vunpack.c.l.b16 %v68
    %v143 = vunpack.c.h.b16 %v68
    %v144 = vunpack.c.l.b16 %v69
    %v145 = vunpack.c.l.b16 %v70
    %v146 = vunpack.c.h.b16 %v70
    %v147 = vunpack.c.l.b16 %v71
    %v148 = vunpack.c.l.b16 %v72
    %v149 = vunpack.c.h.b16 %v72
    %v150 = vunpack.c.l.b16 %v73
    %v151 = vunpack.c.l.b16 %v74
    %v152 = vunpack.c.h.b16 %v74
    %v153 = vunpack.c.l.b16 %v75
    %v154 = vunpack.c.l.b16 %v76
    %v155 = vunpack.c.h.b16 %v76
    %v156 = vunpack.c.l.b16 %v77
    %v157 = vunpack.c.l.b16 %v78
    %v158 = vunpack.c.h.b16 %v78
    %v159 = vunpack.c.l.b16 %v79
    %v160 = vpack.c.b16 %v115, %v112
    %v161 = vpack.c.b16 %v116, %v113
    %v162 = vpack.c.b16 %v117, %v114
    %v163 = vpack.c.b16 %v121, %v118
    %v164 = vpack.c.b16 %v122, %v119
    %v165 = vpack.c.b16 %v123, %v120
    %v166 = vpack.c.b16 %v127, %v124
    %v167 = vpack.c.b16 %v128, %v125
    %v168 = vpack.c.b16 %v129, %v126
    %v169 = vpack.c.b16 %v133, %v130
    %v170 = vpack.c.b16 %v134, %v131
    %v171 = vpack.c.b16 %v135, %v132
    %v172 = vpack.c.b16 %v139, %v136
    %v173 = vpack.c.b16 %v140, %v137
    %v174 = vpack.c.b16 %v141, %v138
    %v175 = vpack.c.b16 %v145, %v142
    %v176 = vpack.c.b16 %v146, %v143
    %v177 = vpack.c.b16 %v147, %v144
    %v178 = vpack.c.b16 %v151, %v148
    %v179 = vpack.c.b16 %v152, %v149
    %v180 = vpack.c.b16 %v153, %v150
    %v181 = vpack.c.b16 %v157, %v154
    %v182 = vpack.c.b16 %v158, %v155
    %v183 = vpack.c.b16 %v159, %v156
    %208 = vmatprep.subr.bf16.mxu0 %v161
    %209 = vmatpush1.bf16.msra.mxu0 %v160
    %210 = vmatprep.subr.bf16.mxu0 %v164
    %211 = vmatpush1.bf16.msra.mxu0 %v163
    %212 = vmatprep.subr.bf16.mxu0 %v167
    %213 = vmatpush1.bf16.msra.mxu0 %v166
    %214 = vmatprep.subr.bf16.mxu0 %v170
    %215 = vmatpush1.bf16.msra.mxu0 %v169
    %216 = vmatprep.subr.bf16.mxu0 %v173
    %217 = vmatpush1.bf16.msra.mxu0 %v172
    %218 = vmatprep.subr.bf16.mxu0 %v176
    %219 = vmatpush1.bf16.msra.mxu0 %v175
    %220 = vmatprep.subr.bf16.mxu0 %v179
    %221 = vmatpush1.bf16.msra.mxu0 %v178
    %222 = vmatprep.subr.bf16.mxu0 %v182
    %223 = vmatpush1.bf16.msra.mxu0 %v181
    %224 = vmatprep.subr.bf16.mxu0 0
    %225 = vmatpush1.bf16.msra.mxu0 0
    %226 = vmatprep.subr.bf16.mxu0 0
    %227 = vmatpush1.bf16.msra.mxu0 0
    %228 = vmatprep.subr.bf16.mxu0 0
    %229 = vmatpush1.bf16.msra.mxu0 0
    %230 = vmatprep.subr.bf16.mxu0 0
    %231 = vmatpush1.bf16.msra.mxu0 0
    %232 = vmatprep.subr.bf16.mxu0 0
    %233 = vmatpush1.bf16.msra.mxu0 0
    %234 = vmatprep.subr.bf16.mxu0 0
    %235 = vmatpush1.bf16.msra.mxu0 0
    %236 = vmatprep.subr.bf16.mxu0 0
    %237 = vmatpush1.bf16.msra.mxu0 0
    %238 = vmatprep.subr.bf16.mxu0 0
    %239 = vmatpush1.bf16.msra.mxu0 0
    %240 = vmatprep.mubr.bf16.mxu0 0
    %241 = vmatmul.mubr.bf16.gmra.mrb[0].mxu0 %v47
    %v242 = vpop.f32.mrb[0].mxu0
    %v243 = vadd.f32 0.0, %v242
    %v244 = vpop.f32.mrb[0].mxu0
    %v245 = vadd.f32 0.0, %v244
    %v246 = vpop.f32.mrb[0].mxu0
    %v247 = vadd.f32 0.0, %v246
    %v248 = vpop.f32.mrb[0].mxu0
    %v249 = vadd.f32 0.0, %v248
    %250 = vdwg.mxu0
    %251 = vmatprep.subr.bf16.mxu0 0
    %252 = vmatpush1.bf16.msra.mxu0 %v162
    %253 = vmatprep.subr.bf16.mxu0 0
    %254 = vmatpush1.bf16.msra.mxu0 %v165
    %255 = vmatprep.subr.bf16.mxu0 0
    %256 = vmatpush1.bf16.msra.mxu0 %v168
    %257 = vmatprep.subr.bf16.mxu0 0
    %258 = vmatpush1.bf16.msra.mxu0 %v171
    %259 = vmatprep.subr.bf16.mxu0 0
    %260 = vmatpush1.bf16.msra.mxu0 %v174
    %261 = vmatprep.subr.bf16.mxu0 0
    %262 = vmatpush1.bf16.msra.mxu0 %v177
    %263 = vmatprep.subr.bf16.mxu0 0
    %264 = vmatpush1.bf16.msra.mxu0 %v180
    %265 = vmatprep.subr.bf16.mxu0 0
    %266 = vmatpush1.bf16.msra.mxu0 %v183
    %267 = vmatprep.subr.bf16.mxu0 0
    %268 = vmatpush1.bf16.msra.mxu0 0
    %269 = vmatprep.subr.bf16.mxu0 0
    %270 = vmatpush1.bf16.msra.mxu0 0
    %271 = vmatprep.subr.bf16.mxu0 0
    %272 = vmatpush1.bf16.msra.mxu0 0
    %273 = vmatprep.subr.bf16.mxu0 0
    %274 = vmatpush1.bf16.msra.mxu0 0
    %275 = vmatprep.subr.bf16.mxu0 0
    %276 = vmatpush1.bf16.msra.mxu0 0
    %277 = vmatprep.subr.bf16.mxu0 0
    %278 = vmatpush1.bf16.msra.mxu0 0
    %279 = vmatprep.subr.bf16.mxu0 0
    %280 = vmatpush1.bf16.msra.mxu0 0
    %281 = vmatprep.subr.bf16.mxu0 0
    %282 = vmatpush1.bf16.msra.mxu0 0
    %283 = vmatprep.mubr.bf16.mxu0 0
    %284 = vmatmul.mubr.bf16.gmra.mrb[0].mxu0 %v47
    %v285 = vpop.f32.mrb[0].mxu0
    %v286 = vadd.f32 0.0, %v285
    %v287 = vpop.f32.mrb[0].mxu0
    %v288 = vpop.f32.mrb[0].mxu0
    %v289 = vadd.f32 0.0, %v288
    %v290 = vpop.f32.mrb[0].mxu0
    %291 = vdwg.mxu0
    %v292 = vadd.f32 %v39, %v243
    %v293 = vadd.f32 %v40, %v245
    %v294 = vadd.f32 %v41, %v286
    %v295 = vadd.f32 %v42, %v247
    %v296 = vadd.f32 %v43, %v249
    %v297 = vadd.f32 %v44, %v289
    %298 = vst [vmem:[#allocation2] sm:$0xff] %v292
    %299 = vst [vmem:[#allocation2 + $0x8] sm:$0xff] %v293
    %300 = vst [vmem:[#allocation2 + $0x10] sm:$0xff] %v294
    %301 = vst [vmem:[#allocation2 + $0x18] sm:$0xff] %v295
    %302 = vst [vmem:[#allocation2 + $0x20] sm:$0xff] %v296
    %303 = vst [vmem:[#allocation2 + $0x28] sm:$0xff] %v297
    // Predicated region
    $region22: #{te_model_forward.12} parent=1 // pred_check
      %p304 = pneg %p29
    $region23: #{te_model_forward.12} parent=1 // pred_check_branch
      %306 = sbr.rel (%p304) target = $region25
    $region24: #{te_model_forward.12} parent=1 // pred_region
      %v307 = vld [vmem:[#allocation2] sm:$0xff]
      %v308 = vld [vmem:[#allocation2 + $0x8] sm:$0xff]
      %v309 = vld [vmem:[#allocation2 + $0x10] sm:$0xff]
      %v310 = vld [vmem:[#allocation2 + $0x18] sm:$0xff]
      %v311 = vld [vmem:[#allocation2 + $0x20] sm:$0xff]
      %v312 = vld [vmem:[#allocation2 + $0x28] sm:$0xff]
      %v313 = vld [vmem:[%s2] sm:$0x7]
      %v315 = vlaneseq
      %v316 = vshrl.u32 %v315, 7
      %v317 = vsub.s32 0, %v316
      %v318 = vrot.slane %v313, %v317
      %v319 = vlaneseq
      %v320 = vshrl.u32 %v319, 7
      %v321 = vsub.s32 1, %v320
      %v322 = vrot.slane %v313, %v321
      %v323 = vlaneseq
      %v324 = vshrl.u32 %v323, 7
      %v325 = vsub.s32 2, %v324
      %v326 = vrot.slane %v313, %v325
      %v330 = vadd.f32 %v307, %v318
      %v331 = vadd.f32 %v308, %v322
      %v332 = vadd.f32 %v309, %v326
      %v333 = vadd.f32 %v310, %v318
      %v334 = vadd.f32 %v311, %v322
      %v335 = vadd.f32 %v312, %v326
      %v336 = vpack.c.bf16 %v333, %v330
      %v337 = vpack.c.bf16 %v334, %v331
      %v338 = vpack.c.bf16 %v335, %v332
      %v342 = vunpack.c.l.b16 %v336
      %v343 = vunpack.c.l.b16 %v337
      %v344 = vunpack.c.l.b16 %v338
      %v345 = vunpack.c.h.b16 %v336
      %v346 = vunpack.c.h.b16 %v337
      %v347 = vunpack.c.h.b16 %v338
      %v348 = vpack.c.b16 %v343, %v342
      %v349 = vpack.c.b16 %v344, %v344
      %v350 = vpack.c.b16 %v346, %v345
      %v351 = vpack.c.b16 %v347, %v347
      %356 = vst [vmem:[%s3] sm:$0xff] %v348
      %357 = vst [vmem:[%s3 + $0x8] sm:$0xf] %v349
      %358 = vst [vmem:[%s3 + $0xc] sm:$0xff] %v350
      %359 = vst [vmem:[%s3 + $0x14] sm:$0xf] %v351
    $region25: #{te_model_forward.12} parent=1 // pred_fallthru
      _
    // Predicated region
    $region26: #{te_model_forward.12} parent=1 // pred_check
      _
    $region27: #{te_model_forward.12} parent=1 // pred_check_branch
      %361 = sbr.rel (0) target = $region29
    $region28: #{te_model_forward.12} parent=1 // pred_region
      _
    $region29: #{te_model_forward.12} parent=1 // pred_fallthru
      _
    // Predicated region
    $region30: #{te_model_forward.12} parent=1 // pred_check
      _
    $region31: #{te_model_forward.12} parent=1 // pred_check_branch
      %363 = sbr.rel (0) target = $region33
    $region32: #{te_model_forward.12} parent=1 // pred_region
      _
    $region33: #{te_model_forward.12} parent=1 // pred_fallthru
      _
    %364 = vsyncpa [#allocation4], 1

// kernel: te_model_forward.13
$region0: #{te_model_forward.13}
  #allocation0 [shape = 'u32[]', space=smem, size = 0x4, offset = 0x4, fixed_abs, tag = 'smem constant byte address 0x4 - core index']
  #allocation1 [shape = 'u32[144,128]{1,0:T(1,128)}', space=vmem, size = 0x12000, scoped, tag = 'internal scratch']
  %s0 = inlined_call_operand.vmem [shape: bf16[2,8,384], index: 0, kind: input, shape index: {}]
  %s1 = inlined_call_operand.vmem [shape: bf16[2,8,128], index: 1, kind: output, shape index: {}]
  %s2 = sld [smem:[#allocation0]]
  $region37: #{te_model_forward.13} parent=0
    _
  %s4 = ssub.s32 1, %s2
  %s5 = scalar_select 0, %s4, %s2
  loop: start=0, step=1, limit=4
  $region2: #{te_model_forward.13} parent=0 // loop_pre_header
    _
  $region3: #{te_model_forward.13} parent=0 // loop_header
    %s7 = sphi 0, %s11
    %p8 = scmp.ge.s32.totalorder %s7, 4
    %s17 = sphi 0, %s19
    %s20 = sphi 0, %s17
    %s21 = sphi 0, %s20
    %s37 = sphi 0, %s21
    %s43 = sphi 0, %s45
    %s46 = sphi 0, %s43
    %s47 = sphi 0, %s46
    %s63 = sphi 0, %s47
  $region4: #{te_model_forward.13} parent=0 // loop_header_branch
    %10 = sbr.rel (%p8) target = $region8
  $region5: #{te_model_forward.13} parent=0 // loop_body
    %s12 = ssub.s32 %s7, 1
    %s13 = ssub.s32 %s7, 2
    %s14 = sadd.s32 %s7, 1
    %s15 = ssub.s32 %s7, %s14
    %p16 = scmp.eq.s32.totalorder %s15, 0
    %s18 = sadd.s32 %s17, 1
    %s19 = scalar_select %p16, %s17, %s18
    %p22 = pneg %p16
    %p23 = scmp.eq.s32.totalorder %s7, 1
    %p24 = por %p22, %p23
    %p25 = scmp.ne.s32.totalorder %s17, %s20
    %p26 = scmp.eq.s32.totalorder %s7, 0
    %p27 = por %p25, %p26
    %p28 = scmp.ne.s32.totalorder %s17, %s20
    %p29 = scmp.eq.s32.totalorder %s12, 1
    %p30 = por %p28, %p29
    %p31 = scmp.ne.s32.totalorder %s20, %s21
    %p32 = scmp.eq.s32.totalorder %s12, 0
    %p33 = por %p31, %p32
    %p34 = scmp.ne.s32.totalorder %s20, %s21
    %p35 = scmp.eq.s32.totalorder %s13, 1
    %p36 = por %p34, %p35
    %p38 = scmp.ne.s32.totalorder %s21, %s37
    %p39 = scmp.eq.s32.totalorder %s13, 0
    %p40 = por %p38, %p39
    %s41 = ssub.s32 %s7, %s14
    %p42 = scmp.eq.s32.totalorder %s41, 0
    %s44 = sadd.s32 %s43, 1
    %s45 = scalar_select %p42, %s43, %s44
    %p48 = pneg %p42
    %p49 = scmp.eq.s32.totalorder %s7, 1
    %p50 = por %p48, %p49
    %p51 = scmp.ne.s32.totalorder %s43, %s46
    %p52 = scmp.eq.s32.totalorder %s7, 0
    %p53 = por %p51, %p52
    %p54 = scmp.ne.s32.totalorder %s43, %s46
    %p55 = scmp.eq.s32.totalorder %s12, 1
    %p56 = por %p54, %p55
    %p57 = scmp.ne.s32.totalorder %s46, %s47
    %p58 = scmp.eq.s32.totalorder %s12, 0
    %p59 = por %p57, %p58
    %p60 = scmp.ne.s32.totalorder %s46, %s47
    %p61 = scmp.eq.s32.totalorder %s13, 1
    %p62 = por %p60, %p61
    %p64 = scmp.ne.s32.totalorder %s47, %s63
    %p65 = scmp.eq.s32.totalorder %s13, 0
    %p66 = por %p64, %p65
    %p67 = scmp.le.s32.totalorder 1, %s7
    %p68 = scmp.lt.s32.totalorder %s7, 3
    %p69 = pnand %p67, %p68
    %p70 = pneg %p69
    // Predicated region
    $region9: #{te_model_forward.13} parent=5 // pred_check
      _
    $region10: #{te_model_forward.13} parent=5 // pred_check_branch
      %72 = sbr.rel (%p69) target = $region12
    $region11: #{te_model_forward.13} parent=5 // pred_region
      %s73 = ssub.s32 %s7, 1
    $region12: #{te_model_forward.13} parent=5 // pred_fallthru
      _
    %p74 = scmp.lt.s32.totalorder %s7, 2
    // Predicated region
    $region13: #{te_model_forward.13} parent=5 // pred_check
      %p75 = pneg %p74
    $region14: #{te_model_forward.13} parent=5 // pred_check_branch
      %77 = sbr.rel (%p75) target = $region16
    $region15: #{te_model_forward.13} parent=5 // pred_region
      // Predicated region
      $region17: #{te_model_forward.13} parent=15 // pred_check
        %p78 = pneg %p27
      $region18: #{te_model_forward.13} parent=15 // pred_check_branch
        %80 = sbr.rel (%p78) target = $region20
      $region19: #{te_model_forward.13} parent=15 // pred_region
        %p81 = scmp.lt.s32.totalorder %s7, 1
        %s82 = scalar_select %p81, %s7, 1
        %s83 = smul.addr %s82, 3
        %s84 = smul.addr %s83, 4
        %s85 = scalar_lea.vmem %s0, %s84
      $region20: #{te_model_forward.13} parent=15 // pred_fallthru
        _
    $region16: #{te_model_forward.13} parent=5 // pred_fallthru
      _
    %p86 = scmp.le.s32.totalorder 1, %s7
    %p87 = scmp.lt.s32.totalorder %s7, 3
    %p88 = pnand %p86, %p87
    %p89 = pneg %p88
    // Predicated region
    $region21: #{te_model_forward.13} parent=5 // pred_check
      _
    $region22: #{te_model_forward.13} parent=5 // pred_check_branch
      %91 = sbr.rel (%p88) target = $region24
    $region23: #{te_model_forward.13} parent=5 // pred_region
      %s92 = ssub.s32 %s7, 1
      %p93 = scmp.lt.s32.totalorder %s12, 1
      %s94 = scalar_select %p93, %s12, 1
      %s95 = smul.addr %s94, 3
      %s96 = smul.addr %s95, 4
      %s97 = scalar_lea.vmem %s0, %s96
      %p98 = pneg %p33
      %p99 = pneg %p30
      %p100 = pneg %p59
      %p101 = pneg %p56
      %p102 = scmp.lt.s32.totalorder %s12, 1
      %s103 = scalar_select %p102, %s12, 1
      %s104 = smul.addr %s103, 4
      %s105 = scalar_lea.vmem %s1, %s104
      %p106 = scmp.lt.s32.totalorder %s12, 1
      %s107 = scalar_select %p106, %s12, 1
      %s108 = smul.addr %s107, 3
      %s109 = smul.addr %s108, 4
      %s110 = scalar_lea.vmem %s0, %s109
      %p111 = scmp.lt.s32.totalorder %s12, 1
      %s112 = scalar_select %p111, %s12, 1
      %s113 = smul.addr %s112, 4
      %s114 = scalar_lea.vmem %s1, %s113
      %116 = vst [vmem:[%s114] sm:$0xf] 0
      %v117 = vlaneseq
      %v118 = vshrl.u32 %v117, 7
      %v119 = vlaneseq
      %v120 = vand.u32 %v119, 127
      %vm121 = vcmp.le.s32.totalorder %v120, %v118
      %v122 = vld [vmem:[%s110] sm:$0xf]
      %v123 = vld [vmem:[%s110 + $0x4] sm:$0xf]
      %v124 = vld [vmem:[%s110 + $0x8] sm:$0xf]
      %vm125 = vcmask 64512
      %v127 = vsel %vm125, %v122, 0
      %v130 = vsel %vm125, %v123, 0
      %132 = vmatprep.subr.bf16.mxu0 0
      %133 = vmatpush1.bf16.xpose.msra.mxu0 %v130
      %134 = vmatprep.subr.bf16.mxu0 0
      %135 = vmatpush1.bf16.xpose.msra.mxu0 0
      %136 = vmatprep.subr.bf16.mxu0 0
      %137 = vmatpush1.bf16.xpose.msra.mxu0 0
      %138 = vmatprep.subr.bf16.mxu0 0
      %139 = vmatpush1.bf16.xpose.msra.mxu0 0
      %140 = vmatprep.subr.bf16.mxu0 0
      %141 = vmatpush1.bf16.xpose.msra.mxu0 0
      %142 = vmatprep.subr.bf16.mxu0 0
      %143 = vmatpush1.bf16.xpose.msra.mxu0 0
      %144 = vmatprep.subr.bf16.mxu0 0
      %145 = vmatpush1.bf16.xpose.msra.mxu0 0
      %146 = vmatprep.subr.bf16.mxu0 0
      %147 = vmatpush1.bf16.xpose.msra.mxu0 0
      %148 = vmatprep.subr.bf16.mxu0 0
      %149 = vmatpush1.bf16.xpose.msra.mxu0 0
      %150 = vmatprep.subr.bf16.mxu0 0
      %151 = vmatpush1.bf16.xpose.msra.mxu0 0
      %152 = vmatprep.subr.bf16.mxu0 0
      %153 = vmatpush1.bf16.xpose.msra.mxu0 0
      %154 = vmatprep.subr.bf16.mxu0 0
      %155 = vmatpush1.bf16.xpose.msra.mxu0 0
      %156 = vmatprep.subr.bf16.mxu0 0
      %157 = vmatpush1.bf16.xpose.msra.mxu0 0
      %158 = vmatprep.subr.bf16.mxu0 0
      %159 = vmatpush1.bf16.xpose.msra.mxu0 0
      %160 = vmatprep.subr.bf16.mxu0 0
      %161 = vmatpush1.bf16.xpose.msra.mxu0 0
      %162 = vmatprep.subr.bf16.mxu0 0
      %163 = vmatpush1.bf16.xpose.msra.mxu0 0
      %164 = vmatprep.mubr.bf16.mxu0 0
      %165 = vmatmul.mubr.bf16.gmra.mrb[0].mxu0 %v127
      %v166 = vpop.f32.mrb[0].mxu0
      %v167 = vadd.f32 0.0, %v166
      %v168 = vpop.f32.mrb[0].mxu0
      %v169 = vpop.f32.mrb[0].mxu0
      %v170 = vpop.f32.mrb[0].mxu0
      %171 = vdwg.mxu0
      %v172 = vmul.f32 %v167, 0.35355338
      %v173 = vsel %vm121, %v172, -inf
      %v174 = vsel %vm125, %v173, -inf
      %175 = vmax.xlane.f32.xlu0 %v174
      %v176 = vpop.xlane.xlu0 %175
      %v177 = vsub.f32 %v173, %v176
      %v178 = vmul.f32 %v177, 1.442695
      %v179 = vpow.pop %v178
      %v180 = vsel %vm125, %v179, 0.0
      %181 = vadd.xlane.f32.xlu0 %v180
      %v182 = vpop.xlane.xlu0 %181
      %v183 = vrcp.pop %v182
      %v184 = vmul.f32 %v179, %v183
      %v185 = vpack.c.bf16 %v184, %v184
      %v187 = vsel %vm125, %v185, 0
      %vm189 = vcmask 1043456
      %v191 = vsel %vm189, %v124, 0
      %193 = vmatprep.subr.bf16.mxu0 0
      %194 = vmatpush1.bf16.msra.mxu0 %v191
      %195 = vmatprep.subr.bf16.mxu0 0
      %196 = vmatpush1.bf16.msra.mxu0 0
      %197 = vmatprep.subr.bf16.mxu0 0
      %198 = vmatpush1.bf16.msra.mxu0 0
      %199 = vmatprep.subr.bf16.mxu0 0
      %200 = vmatpush1.bf16.msra.mxu0 0
      %201 = vmatprep.subr.bf16.mxu0 0
      %202 = vmatpush1.bf16.msra.mxu0 0
      %203 = vmatprep.subr.bf16.mxu0 0
      %204 = vmatpush1.bf16.msra.mxu0 0
      %205 = vmatprep.subr.bf16.mxu0 0
      %206 = vmatpush1.bf16.msra.mxu0 0
      %207 = vmatprep.subr.bf16.mxu0 0
      %208 = vmatpush1.bf16.msra.mxu0 0
      %209 = vmatprep.subr.bf16.mxu0 0
      %210 = vmatpush1.bf16.msra.mxu0 0
      %211 = vmatprep.subr.bf16.mxu0 0
      %212 = vmatpush1.bf16.msra.mxu0 0
      %213 = vmatprep.subr.bf16.mxu0 0
      %214 = vmatpush1.bf16.msra.mxu0 0
      %215 = vmatprep.subr.bf16.mxu0 0
      %216 = vmatpush1.bf16.msra.mxu0 0
      %217 = vmatprep.subr.bf16.mxu0 0
      %218 = vmatpush1.bf16.msra.mxu0 0
      %219 = vmatprep.subr.bf16.mxu0 0
      %220 = vmatpush1.bf16.msra.mxu0 0
      %221 = vmatprep.subr.bf16.mxu0 0
      %222 = vmatpush1.bf16.msra.mxu0 0
      %223 = vmatprep.subr.bf16.mxu0 0
      %224 = vmatpush1.bf16.msra.mxu0 0
      %225 = vmatprep.mubr.bf16.mxu0 0
      %226 = vmatmul.mubr.bf16.gmra.mrb[0].mxu0 %v187
      %v227 = vpop.f32.mrb[0].mxu0
      %v228 = vadd.f32 0.0, %v227
      %v229 = vpop.f32.mrb[0].mxu0
      %v230 = vpop.f32.mrb[0].mxu0
      %v231 = vpop.f32.mrb[0].mxu0
      %232 = vdwg.mxu0
      %v233 = vpack.c.bf16 %v228, %v228
      %vm234 = vcmask 60416
      %235 = vst.msk [vmem:[%s114] sm:$0xf] %vm234, %v233
      %v236 = vld [vmem:[%s110] sm:$0xf]
      %v237 = vld [vmem:[%s110 + $0x4] sm:$0xf]
      %v238 = vld [vmem:[%s110 + $0x8] sm:$0xf]
      %v240 = vunpack.c.l.b16 %v236
      %v241 = vpack.c.b16 %v240, %v240
      %242 = vrot.lane.b32.xlu0 %v241, 120
      %v243 = vpop.permute.xlu0 %242
      %v245 = vunpack.c.l.b16 %v237
      %v246 = vpack.c.b16 %v245, %v245
      %247 = vrot.lane.b32.xlu0 %v246, 120
      %v248 = vpop.permute.xlu0 %247
      %v250 = vsel %vm125, %v243, 0
      %v253 = vsel %vm125, %v248, 0
      %255 = vmatprep.subr.bf16.mxu0 0
      %256 = vmatpush1.bf16.xpose.msra.mxu0 %v253
      %257 = vmatprep.subr.bf16.mxu0 0
      %258 = vmatpush1.bf16.xpose.msra.mxu0 0
      %259 = vmatprep.subr.bf16.mxu0 0
      %260 = vmatpush1.bf16.xpose.msra.mxu0 0
      %261 = vmatprep.subr.bf16.mxu0 0
      %262 = vmatpush1.bf16.xpose.msra.mxu0 0
      %263 = vmatprep.subr.bf16.mxu0 0
      %264 = vmatpush1.bf16.xpose.msra.mxu0 0
      %265 = vmatprep.subr.bf16.mxu0 0
      %266 = vmatpush1.bf16.xpose.msra.mxu0 0
      %267 = vmatprep.subr.bf16.mxu0 0
      %268 = vmatpush1.bf16.xpose.msra.mxu0 0
      %269 = vmatprep.subr.bf16.mxu0 0
      %270 = vmatpush1.bf16.xpose.msra.mxu0 0
      %271 = vmatprep.subr.bf16.mxu0 0
      %272 = vmatpush1.bf16.xpose.msra.mxu0 0
      %273 = vmatprep.subr.bf16.mxu0 0
      %274 = vmatpush1.bf16.xpose.msra.mxu0 0
      %275 = vmatprep.subr.bf16.mxu0 0
      %276 = vmatpush1.bf16.xpose.msra.mxu0 0
      %277 = vmatprep.subr.bf16.mxu0 0
      %278 = vmatpush1.bf16.xpose.msra.mxu0 0
      %279 = vmatprep.subr.bf16.mxu0 0
      %280 = vmatpush1.bf16.xpose.msra.mxu0 0
      %281 = vmatprep.subr.bf16.mxu0 0
      %282 = vmatpush1.bf16.xpose.msra.mxu0 0
      %283 = vmatprep.subr.bf16.mxu0 0
      %284 = vmatpush1.bf16.xpose.msra.mxu0 0
      %285 = vmatprep.subr.bf16.mxu0 0
      %286 = vmatpush1.bf16.xpose.msra.mxu0 0
      %287 = vmatprep.mubr.bf16.mxu0 0
      %288 = vmatmul.mubr.bf16.gmra.mrb[0].mxu0 %v250
      %v289 = vpop.f32.mrb[0].mxu0
      %v290 = vadd.f32 0.0, %v289
      %v291 = vpop.f32.mrb[0].mxu0
      %v292 = vpop.f32.mrb[0].mxu0
      %v293 = vpop.f32.mrb[0].mxu0
      %294 = vdwg.mxu0
      %v295 = vmul.f32 %v290, 0.35355338
      %v296 = vsel %vm121, %v295, -inf
      %v297 = vsel %vm125, %v296, -inf
      %298 = vmax.xlane.f32.xlu0 %v297
      %v299 = vpop.xlane.xlu0 %298
      %v300 = vsub.f32 %v296, %v299
      %v301 = vmul.f32 %v300, 1.442695
      %v302 = vpow.pop %v301
      %v303 = vsel %vm125, %v302, 0.0
      %304 = vadd.xlane.f32.xlu0 %v303
      %v305 = vpop.xlane.xlu0 %304
      %v306 = vrcp.pop %v305
      %v307 = vmul.f32 %v302, %v306
      %v308 = vpack.c.bf16 %v307, %v307
      %v310 = vunpack.c.l.b16 %v238
      %v311 = vpack.c.b16 %v310, %v310
      %312 = vrot.lane.b32.xlu0 %v311, 120
      %v313 = vpop.permute.xlu0 %312
      %v315 = vsel %vm125, %v308, 0
      %v318 = vsel %vm189, %v313, 0
      %320 = vmatprep.subr.bf16.mxu0 0
      %321 = vmatpush1.bf16.msra.mxu0 %v318
      %322 = vmatprep.subr.bf16.mxu0 0
      %323 = vmatpush1.bf16.msra.mxu0 0
      %324 = vmatprep.subr.bf16.mxu0 0
      %325 = vmatpush1.bf16.msra.mxu0 0
      %326 = vmatprep.subr.bf16.mxu0 0
      %327 = vmatpush1.bf16.msra.mxu0 0
      %328 = vmatprep.subr.bf16.mxu0 0
      %329 = vmatpush1.bf16.msra.mxu0 0
      %330 = vmatprep.subr.bf16.mxu0 0
      %331 = vmatpush1.bf16.msra.mxu0 0
      %332 = vmatprep.subr.bf16.mxu0 0
      %333 = vmatpush1.bf16.msra.mxu0 0
      %334 = vmatprep.subr.bf16.mxu0 0
      %335 = vmatpush1.bf16.msra.mxu0 0
      %336 = vmatprep.subr.bf16.mxu0 0
      %337 = vmatpush1.bf16.msra.mxu0 0
      %338 = vmatprep.subr.bf16.mxu0 0
      %339 = vmatpush1.bf16.msra.mxu0 0
      %340 = vmatprep.subr.bf16.mxu0 0
      %341 = vmatpush1.bf16.msra.mxu0 0
      %342 = vmatprep.subr.bf16.mxu0 0
      %343 = vmatpush1.bf16.msra.mxu0 0
      %344 = vmatprep.subr.bf16.mxu0 0
      %345 = vmatpush1.bf16.msra.mxu0 0
      %346 = vmatprep.subr.bf16.mxu0 0
      %347 = vmatpush1.bf16.msra.mxu0 0
      %348 = vmatprep.subr.bf16.mxu0 0
      %349 = vmatpush1.bf16.msra.mxu0 0
      %350 = vmatprep.subr.bf16.mxu0 0
      %351 = vmatpush1.bf16.msra.mxu0 0
      %352 = vmatprep.mubr.bf16.mxu0 0
      %353 = vmatmul.mubr.bf16.gmra.mrb[0].mxu0 %v315
      %v354 = vpop.f32.mrb[0].mxu0
      %v355 = vadd.f32 0.0, %v354
      %v356 = vpop.f32.mrb[0].mxu0
      %v357 = vpop.f32.mrb[0].mxu0
      %v358 = vpop.f32.mrb[0].mxu0
      %359 = vdwg.mxu0
      %v360 = vpack.c.bf16 %v355, %v355
      %v362 = vunpack.c.l.b16 %v360
      %v363 = vpack.c.b16 %v362, %v362
      %364 = vrot.lane.b32.xlu0 %v363, 8
      %v365 = vpop.permute.xlu0 %364
      %vm367 = vcmask 126016
      %368 = vst.msk [vmem:[%s114] sm:$0xf] %vm367, %v365
      %v369 = vld [vmem:[%s110] sm:$0xf]
      %v370 = vld [vmem:[%s110 + $0x4] sm:$0xf]
      %v371 = vld [vmem:[%s110 + $0x8] sm:$0xf]
      %v373 = vunpack.c.l.b16 %v369
      %v374 = vpack.c.b16 %v373, %v373
      %375 = vrot.lane.b32.xlu0 %v374, 112
      %v376 = vpop.permute.xlu0 %375
      %v378 = vunpack.c.l.b16 %v370
      %v379 = vpack.c.b16 %v378, %v378
      %380 = vrot.lane.b32.xlu0 %v379, 112
      %v381 = vpop.permute.xlu0 %380
      %v383 = vsel %vm125, %v376, 0
      %v386 = vsel %vm125, %v381, 0
      %388 = vmatprep.subr.bf16.mxu0 0
      %389 = vmatpush1.bf16.xpose.msra.mxu0 %v386
      %390 = vmatprep.subr.bf16.mxu0 0
      %391 = vmatpush1.bf16.xpose.msra.mxu0 0
      %392 = vmatprep.subr.bf16.mxu0 0
      %393 = vmatpush1.bf16.xpose.msra.mxu0 0
      %394 = vmatprep.subr.bf16.mxu0 0
      %395 = vmatpush1.bf16.xpose.msra.mxu0 0
      %396 = vmatprep.subr.bf16.mxu0 0
      %397 = vmatpush1.bf16.xpose.msra.mxu0 0
      %398 = vmatprep.subr.bf16.mxu0 0
      %399 = vmatpush1.bf16.xpose.msra.mxu0 0
      %400 = vmatprep.subr.bf16.mxu0 0
      %401 = vmatpush1.bf16.xpose.msra.mxu0 0
      %402 = vmatprep.subr.bf16.mxu0 0
      %403 = vmatpush1.bf16.xpose.msra.mxu0 0
      %404 = vmatprep.subr.bf16.mxu0 0
      %405 = vmatpush1.bf16.xpose.msra.mxu0 0
      %406 = vmatprep.subr.bf16.mxu0 0
      %407 = vmatpush1.bf16.xpose.msra.mxu0 0
      %408 = vmatprep.subr.bf16.mxu0 0
      %409 = vmatpush1.bf16.xpose.msra.mxu0 0
      %410 = vmatprep.subr.bf16.mxu0 0
      %411 = vmatpush1.bf16.xpose.msra.mxu0 0
      %412 = vmatprep.subr.bf16.mxu0 0
      %413 = vmatpush1.bf16.xpose.msra.mxu0 0
      %414 = vmatprep.subr.bf16.mxu0 0
      %415 = vmatpush1.bf16.xpose.msra.mxu0 0
      %416 = vmatprep.subr.bf16.mxu0 0
      %417 = vmatpush1.bf16.xpose.msra.mxu0 0
      %418 = vmatprep.subr.bf16.mxu0 0
      %419 = vmatpush1.bf16.xpose.msra.mxu0 0
      %420 = vmatprep.mubr.bf16.mxu0 0
      %421 = vmatmul.mubr.bf16.gmra.mrb[0].mxu0 %v383
      %v422 = vpop.f32.mrb[0].mxu0
      %v423 = vadd.f32 0.0, %v422
      %v424 = vpop.f32.mrb[0].mxu0
      %v425 = vpop.f32.mrb[0].mxu0
      %v426 = vpop.f32.mrb[0].mxu0
      %427 = vdwg.mxu0
      %v428 = vmul.f32 %v423, 0.35355338
      %v429 = vsel %vm121, %v428, -inf
      %v430 = vsel %vm125, %v429, -inf
      %431 = vmax.xlane.f32.xlu0 %v430
      %v432 = vpop.xlane.xlu0 %431
      %v433 = vsub.f32 %v429, %v432
      %v434 = vmul.f32 %v433, 1.442695
      %v435 = vpow.pop %v434
      %v436 = vsel %vm125, %v435, 0.0
      %437 = vadd.xlane.f32.xlu0 %v436
      %v438 = vpop.xlane.xlu0 %437
      %v439 = vrcp.pop %v438
      %v440 = vmul.f32 %v435, %v439
      %v441 = vpack.c.bf16 %v440, %v440
      %v443 = vunpack.c.l.b16 %v371
      %v444 = vpack.c.b16 %v443, %v443
      %445 = vrot.lane.b32.xlu0 %v444, 112
      %v446 = vpop.permute.xlu0 %445
      %v448 = vsel %vm125, %v441, 0
      %v451 = vsel %vm189, %v446, 0
      %453 = vmatprep.subr.bf16.mxu0 0
      %454 = vmatpush1.bf16.msra.mxu0 %v451
      %455 = vmatprep.subr.bf16.mxu0 0
      %456 = vmatpush1.bf16.msra.mxu0 0
      %457 = vmatprep.subr.bf16.mxu0 0
      %458 = vmatpush1.bf16.msra.mxu0 0
      %459 = vmatprep.subr.bf16.mxu0 0
      %460 = vmatpush1.bf16.msra.mxu0 0
      %461 = vmatprep.subr.bf16.mxu0 0
      %462 = vmatpush1.bf16.msra.mxu0 0
      %463 = vmatprep.subr.bf16.mxu0 0
      %464 = vmatpush1.bf16.msra.mxu0 0
      %465 = vmatprep.subr.bf16.mxu0 0
      %466 = vmatpush1.bf16.msra.mxu0 0
      %467 = vmatprep.subr.bf16.mxu0 0
      %468 = vmatpush1.bf16.msra.mxu0 0
      %469 = vmatprep.subr.bf16.mxu0 0
      %470 = vmatpush1.bf16.msra.mxu0 0
      %471 = vmatprep.subr.bf16.mxu0 0
      %472 = vmatpush1.bf16.msra.mxu0 0
      %473 = vmatprep.subr.bf16.mxu0 0
      %474 = vmatpush1.bf16.msra.mxu0 0
      %475 = vmatprep.subr.bf16.mxu0 0
      %476 = vmatpush1.bf16.msra.mxu0 0
      %477 = vmatprep.subr.bf16.mxu0 0
      %478 = vmatpush1.bf16.msra.mxu0 0
      %479 = vmatprep.subr.bf16.mxu0 0
      %480 = vmatpush1.bf16.msra.mxu0 0
      %481 = vmatprep.subr.bf16.mxu0 0
      %482 = vmatpush1.bf16.msra.mxu0 0
      %483 = vmatprep.subr.bf16.mxu0 0
      %484 = vmatpush1.bf16.msra.mxu0 0
      %485 = vmatprep.mubr.bf16.mxu0 0
      %486 = vmatmul.mubr.bf16.gmra.mrb[0].mxu0 %v448
      %v487 = vpop.f32.mrb[0].mxu0
      %v488 = vadd.f32 0.0, %v487
      %v489 = vpop.f32.mrb[0].mxu0
      %v490 = vpop.f32.mrb[0].mxu0
      %v491 = vpop.f32.mrb[0].mxu0
      %492 = vdwg.mxu0
      %v493 = vpack.c.bf16 %v488, %v488
      %v495 = vunpack.c.l.b16 %v493
      %v496 = vpack.c.b16 %v495, %v495
      %497 = vrot.lane.b32.xlu0 %v496, 16
      %v498 = vpop.permute.xlu0 %497
      %vm500 = vcmask 191616
      %501 = vst.msk [vmem:[%s114] sm:$0xf] %vm500, %v498
      %v502 = vld [vmem:[%s110] sm:$0xf]
      %v503 = vld [vmem:[%s110 + $0x4] sm:$0xf]
      %v504 = vld [vmem:[%s110 + $0x8] sm:$0xf]
      %v506 = vunpack.c.l.b16 %v502
      %v507 = vpack.c.b16 %v506, %v506
      %508 = vrot.lane.b32.xlu0 %v507, 104
      %v509 = vpop.permute.xlu0 %508
      %v511 = vunpack.c.l.b16 %v503
      %v512 = vpack.c.b16 %v511, %v511
      %513 = vrot.lane.b32.xlu0 %v512, 104
      %v514 = vpop.permute.xlu0 %513
      %v516 = vsel %vm125, %v509, 0
      %v519 = vsel %vm125, %v514, 0
      %521 = vmatprep.subr.bf16.mxu0 0
      %522 = vmatpush1.bf16.xpose.msra.mxu0 %v519
      %523 = vmatprep.subr.bf16.mxu0 0
      %524 = vmatpush1.bf16.xpose.msra.mxu0 0
      %525 = vmatprep.subr.bf16.mxu0 0
      %526 = vmatpush1.bf16.xpose.msra.mxu0 0
      %527 = vmatprep.subr.bf16.mxu0 0
      %528 = vmatpush1.bf16.xpose.msra.mxu0 0
      %529 = vmatprep.subr.bf16.mxu0 0
      %530 = vmatpush1.bf16.xpose.msra.mxu0 0
      %531 = vmatprep.subr.bf16.mxu0 0
      %532 = vmatpush1.bf16.xpose.msra.mxu0 0
      %533 = vmatprep.subr.bf16.mxu0 0
      %534 = vmatpush1.bf16.xpose.msra.mxu0 0
      %535 = vmatprep.subr.bf16.mxu0 0
      %536 = vmatpush1.bf16.xpose.msra.mxu0 0
      %537 = vmatprep.subr.bf16.mxu0 0
      %538 = vmatpush1.bf16.xpose.msra.mxu0 0
      %539 = vmatprep.subr.bf16.mxu0 0
      %540 = vmatpush1.bf16.xpose.msra.mxu0 0
      %541 = vmatprep.subr.bf16.mxu0 0
      %542 = vmatpush1.bf16.xpose.msra.mxu0 0
      %543 = vmatprep.subr.bf16.mxu0 0
      %544 = vmatpush1.bf16.xpose.msra.mxu0 0
      %545 = vmatprep.subr.bf16.mxu0 0
      %546 = vmatpush1.bf16.xpose.msra.mxu0 0
      %547 = vmatprep.subr.bf16.mxu0 0
      %548 = vmatpush1.bf16.xpose.msra.mxu0 0
      %549 = vmatprep.subr.bf16.mxu0 0
      %550 = vmatpush1.bf16.xpose.msra.mxu0 0
      %551 = vmatprep.subr.bf16.mxu0 0
      %552 = vmatpush1.bf16.xpose.msra.mxu0 0
      %553 = vmatprep.mubr.bf16.mxu0 0
      %554 = vmatmul.mubr.bf16.gmra.mrb[0].mxu0 %v516
      %v555 = vpop.f32.mrb[0].mxu0
      %v556 = vadd.f32 0.0, %v555
      %v557 = vpop.f32.mrb[0].mxu0
      %v558 = vpop.f32.mrb[0].mxu0
      %v559 = vpop.f32.mrb[0].mxu0
      %560 = vdwg.mxu0
      %v561 = vmul.f32 %v556, 0.35355338
      %v562 = vsel %vm121, %v561, -inf
      %v563 = vsel %vm125, %v562, -inf
      %564 = vmax.xlane.f32.xlu0 %v563
      %v565 = vpop.xlane.xlu0 %564
      %v566 = vsub.f32 %v562, %v565
      %v567 = vmul.f32 %v566, 1.442695
      %v568 = vpow.pop %v567
      %v569 = vsel %vm125, %v568, 0.0
      %570 = vadd.xlane.f32.xlu0 %v569
      %v571 = vpop.xlane.xlu0 %570
      %v572 = vrcp.pop %v571
      %v573 = vmul.f32 %v568, %v572
      %v574 = vpack.c.bf16 %v573, %v573
      %v576 = vunpack.c.l.b16 %v504
      %v577 = vpack.c.b16 %v576, %v576
      %578 = vrot.lane.b32.xlu0 %v577, 104
      %v579 = vpop.permute.xlu0 %578
      %v581 = vsel %vm125, %v574, 0
      %v584 = vsel %vm189, %v579, 0
      %586 = vmatprep.subr.bf16.mxu0 0
      %587 = vmatpush1.bf16.msra.mxu0 %v584
      %588 = vmatprep.subr.bf16.mxu0 0
      %589 = vmatpush1.bf16.msra.mxu0 0
      %590 = vmatprep.subr.bf16.mxu0 0
      %591 = vmatpush1.bf16.msra.mxu0 0
      %592 = vmatprep.subr.bf16.mxu0 0
      %593 = vmatpush1.bf16.msra.mxu0 0
      %594 = vmatprep.subr.bf16.mxu0 0
      %595 = vmatpush1.bf16.msra.mxu0 0
      %596 = vmatprep.subr.bf16.mxu0 0
      %597 = vmatpush1.bf16.msra.mxu0 0
      %598 = vmatprep.subr.bf16.mxu0 0
      %599 = vmatpush1.bf16.msra.mxu0 0
      %600 = vmatprep.subr.bf16.mxu0 0
      %601 = vmatpush1.bf16.msra.mxu0 0
      %602 = vmatprep.subr.bf16.mxu0 0
      %603 = vmatpush1.bf16.msra.mxu0 0
      %604 = vmatprep.subr.bf16.mxu0 0
      %605 = vmatpush1.bf16.msra.mxu0 0
      %606 = vmatprep.subr.bf16.mxu0 0
      %607 = vmatpush1.bf16.msra.mxu0 0
      %608 = vmatprep.subr.bf16.mxu0 0
      %609 = vmatpush1.bf16.msra.mxu0 0
      %610 = vmatprep.subr.bf16.mxu0 0
      %611 = vmatpush1.bf16.msra.mxu0 0
      %612 = vmatprep.subr.bf16.mxu0 0
      %613 = vmatpush1.bf16.msra.mxu0 0
      %614 = vmatprep.subr.bf16.mxu0 0
      %615 = vmatpush1.bf16.msra.mxu0 0
      %616 = vmatprep.subr.bf16.mxu0 0
      %617 = vmatpush1.bf16.msra.mxu0 0
      %618 = vmatprep.mubr.bf16.mxu0 0
      %619 = vmatmul.mubr.bf16.gmra.mrb[0].mxu0 %v581
      %v620 = vpop.f32.mrb[0].mxu0
      %v621 = vadd.f32 0.0, %v620
      %v622 = vpop.f32.mrb[0].mxu0
      %v623 = vpop.f32.mrb[0].mxu0
      %v624 = vpop.f32.mrb[0].mxu0
      %625 = vdwg.mxu0
      %v626 = vpack.c.bf16 %v621, %v621
      %v628 = vunpack.c.l.b16 %v626
      %v629 = vpack.c.b16 %v628, %v628
      %630 = vrot.lane.b32.xlu0 %v629, 24
      %v631 = vpop.permute.xlu0 %630
      %vm633 = vcmask 257216
      %634 = vst.msk [vmem:[%s114] sm:$0xf] %vm633, %v631
      %p635 = scmp.lt.s32.totalorder %s12, 1
      %s636 = scalar_select %p635, %s12, 1
      %s637 = smul.addr %s636, 4
      %s638 = scalar_lea.vmem %s1, %s637
      // Predicated region
      $region25: #{te_model_forward.13} parent=23 // pred_check
        %p639 = pneg %p56
      $region26: #{te_model_forward.13} parent=23 // pred_check_branch
        %641 = sbr.rel (%p639) target = $region28
      $region27: #{te_model_forward.13} parent=23 // pred_region
        _
      $region28: #{te_model_forward.13} parent=23 // pred_fallthru
        _
    $region24: #{te_model_forward.13} parent=5 // pred_fallthru
      _
    %p642 = scmp.le.s32.totalorder 2, %s7
    // Predicated region
    $region29: #{te_model_forward.13} parent=5 // pred_check
      %p643 = pneg %p642
    $region30: #{te_model_forward.13} parent=5 // pred_check_branch
      %645 = sbr.rel (%p643) target = $region32
    $region31: #{te_model_forward.13} parent=5 // pred_region
      %s646 = ssub.s32 %s7, 2
      // Predicated region
      $region33: #{te_model_forward.13} parent=31 // pred_check
        %p647 = pneg %p62
      $region34: #{te_model_forward.13} parent=31 // pred_check_branch
        %649 = sbr.rel (%p647) target = $region36
      $region35: #{te_model_forward.13} parent=31 // pred_region
        %p650 = scmp.lt.s32.totalorder %s13, 1
        %s651 = scalar_select %p650, %s13, 1
        %s652 = smul.addr %s651, 4
        %s653 = scalar_lea.vmem %s1, %s652
      $region36: #{te_model_forward.13} parent=31 // pred_fallthru
        _
    $region32: #{te_model_forward.13} parent=5 // pred_fallthru
      _
  $region6: #{te_model_forward.13} parent=0 // loop_footer
    %s11 = sadd.s32 1, %s7
  $region7: #{te_model_forward.13} parent=0 // loop_footer_branch
    %6 = sbr.rel target = $region3
  $region8: #{te_model_forward.13} parent=0 // loop_exit
    _

// kernel: te_model_forward.14
$region0: #{te_model_forward.14}
  #allocation0 [shape = 'u32[]', space=smem, size = 0x4, offset = 0x4, fixed_abs, tag = 'smem constant byte address 0x4 - core index']
  #allocation1 [shape = 'u32[144,128]{1,0:T(1,128)}', space=vmem, size = 0x12000, scoped, tag = 'internal scratch']
  #allocation2 [shape = 'f32[16,128]{1,0:T(8,128)}', space=vmem, size = 0x2000, scoped, tag = 'scratch operand']
  %s0 = inlined_call_operand.vmem [shape: bf16[16,128], index: 0, kind: input, shape index: {}]
  %s1 = inlined_call_operand.vmem [shape: bf16[128,128], index: 1, kind: input, shape index: {}]
  %s2 = inlined_call_operand.vmem [shape: f32[1,128], index: 2, kind: input, shape index: {}]
  %s3 = inlined_call_operand.vmem [shape: f32[16,128], index: 3, kind: input, shape index: {}]
  %s4 = inlined_call_operand.vmem [shape: f32[1,128], index: 4, kind: input, shape index: {}]
  %s5 = inlined_call_operand.vmem [shape: f32[1,128], index: 5, kind: input, shape index: {}]
  %s6 = inlined_call_operand.vmem [shape: f32[16,128], index: 6, kind: output, shape index: {}]
  %s7 = sld [smem:[#allocation0]]
  $region42: #{te_model_forward.14} parent=0
    _
  %s9 = ssub.s32 1, %s7
  %s10 = scalar_select 0, %s9, %s7
  // Predicated region
  $region2: #{te_model_forward.14} parent=0 // pred_check
    _
  $region3: #{te_model_forward.14} parent=0 // pred_check_branch
    %12 = sbr.rel (0) target = $region5
  $region4: #{te_model_forward.14} parent=0 // pred_region
    _
  $region5: #{te_model_forward.14} parent=0 // pred_fallthru
    _
  // Predicated region
  $region6: #{te_model_forward.14} parent=0 // pred_check
    _
  $region7: #{te_model_forward.14} parent=0 // pred_check_branch
    %14 = sbr.rel (0) target = $region9
  $region8: #{te_model_forward.14} parent=0 // pred_region
    _
  $region9: #{te_model_forward.14} parent=0 // pred_fallthru
    _
  // Predicated region
  $region10: #{te_model_forward.14} parent=0 // pred_check
    _
  $region11: #{te_model_forward.14} parent=0 // pred_check_branch
    %16 = sbr.rel (0) target = $region13
  $region12: #{te_model_forward.14} parent=0 // pred_region
    _
  $region13: #{te_model_forward.14} parent=0 // pred_fallthru
    _
  // Predicated region
  $region14: #{te_model_forward.14} parent=0 // pred_check
    _
  $region15: #{te_model_forward.14} parent=0 // pred_check_branch
    %18 = sbr.rel (0) target = $region17
  $region16: #{te_model_forward.14} parent=0 // pred_region
    _
  $region17: #{te_model_forward.14} parent=0 // pred_fallthru
    _
  // Predicated region
  $region18: #{te_model_forward.14} parent=0 // pred_check
    _
  $region19: #{te_model_forward.14} parent=0 // pred_check_branch
    %20 = sbr.rel (0) target = $region21
  $region20: #{te_model_forward.14} parent=0 // pred_region
    _
  $region21: #{te_model_forward.14} parent=0 // pred_fallthru
    _
  // Predicated region
  $region22: #{te_model_forward.14} parent=0 // pred_check
    _
  $region23: #{te_model_forward.14} parent=0 // pred_check_branch
    %22 = sbr.rel (0) target = $region25
  $region24: #{te_model_forward.14} parent=0 // pred_region
    _
  $region25: #{te_model_forward.14} parent=0 // pred_fallthru
    _
  %p24 = scmp.eq.s32.totalorder 0, 0
  // Predicated region
  $region26: #{te_model_forward.14} parent=0 // pred_check
    %p25 = pneg %p24
  $region27: #{te_model_forward.14} parent=0 // pred_check_branch
    %27 = sbr.rel (%p25) target = $region29
  $region28: #{te_model_forward.14} parent=0 // pred_region
    %28 = vst [vmem:[#allocation2] sm:$0xff] 0.0
    %29 = vst [vmem:[#allocation2 + $0x8] sm:$0xff] 0.0
  $region29: #{te_model_forward.14} parent=0 // pred_fallthru
    _
  %v30 = vld [vmem:[#allocation2] sm:$0xff]
  %v31 = vld [vmem:[#allocation2 + $0x8] sm:$0xff]
  %v32 = vld [vmem:[%s0] sm:$0xf]
  %v33 = vld [vmem:[%s0 + $0x4] sm:$0xf]
  %v34 = vld [vmem:[%s1] sm:$0xf]
  %v35 = vld [vmem:[%s1 + $0x4] sm:$0xf]
  %v36 = vld [vmem:[%s1 + $0x8] sm:$0xf]
  %v37 = vld [vmem:[%s1 + $0xc] sm:$0xf]
  %v38 = vld [vmem:[%s1 + $0x10] sm:$0xf]
  %v39 = vld [vmem:[%s1 + $0x14] sm:$0xf]
  %v40 = vld [vmem:[%s1 + $0x18] sm:$0xf]
  %v41 = vld [vmem:[%s1 + $0x1c] sm:$0xf]
  %v42 = vld [vmem:[%s1 + $0x20] sm:$0xf]
  %v43 = vld [vmem:[%s1 + $0x24] sm:$0xf]
  %v44 = vld [vmem:[%s1 + $0x28] sm:$0xf]
  %v45 = vld [vmem:[%s1 + $0x2c] sm:$0xf]
  %v46 = vld [vmem:[%s1 + $0x30] sm:$0xf]
  %v47 = vld [vmem:[%s1 + $0x34] sm:$0xf]
  %v48 = vld [vmem:[%s1 + $0x38] sm:$0xf]
  %v49 = vld [vmem:[%s1 + $0x3c] sm:$0xf]
  %v52 = vunpack.c.l.b16 %v32
  %v53 = vunpack.c.l.b16 %v33
  %v54 = vpack.c.b16 %v53, %v52
  %v72 = vunpack.c.l.b16 %v34
  %v73 = vunpack.c.l.b16 %v35
  %v74 = vunpack.c.l.b16 %v36
  %v75 = vunpack.c.l.b16 %v37
  %v76 = vunpack.c.l.b16 %v38
  %v77 = vunpack.c.l.b16 %v39
  %v78 = vunpack.c.l.b16 %v40
  %v79 = vunpack.c.l.b16 %v41
  %v80 = vunpack.c.l.b16 %v42
  %v81 = vunpack.c.l.b16 %v43
  %v82 = vunpack.c.l.b16 %v44
  %v83 = vunpack.c.l.b16 %v45
  %v84 = vunpack.c.l.b16 %v46
  %v85 = vunpack.c.l.b16 %v47
  %v86 = vunpack.c.l.b16 %v48
  %v87 = vunpack.c.l.b16 %v49
  %v88 = vpack.c.b16 %v73, %v72
  %v89 = vpack.c.b16 %v75, %v74
  %v90 = vpack.c.b16 %v77, %v76
  %v91 = vpack.c.b16 %v79, %v78
  %v92 = vpack.c.b16 %v81, %v80
  %v93 = vpack.c.b16 %v83, %v82
  %v94 = vpack.c.b16 %v85, %v84
  %v95 = vpack.c.b16 %v87, %v86
  %104 = vmatprep.subr.bf16.mxu0 0
  %105 = vmatpush1.bf16.msra.mxu0 %v88
  %106 = vmatprep.subr.bf16.mxu0 0
  %107 = vmatpush1.bf16.msra.mxu0 %v89
  %108 = vmatprep.subr.bf16.mxu0 0
  %109 = vmatpush1.bf16.msra.mxu0 %v90
  %110 = vmatprep.subr.bf16.mxu0 0
  %111 = vmatpush1.bf16.msra.mxu0 %v91
  %112 = vmatprep.subr.bf16.mxu0 0
  %113 = vmatpush1.bf16.msra.mxu0 %v92
  %114 = vmatprep.subr.bf16.mxu0 0
  %115 = vmatpush1.bf16.msra.mxu0 %v93
  %116 = vmatprep.subr.bf16.mxu0 0
  %117 = vmatpush1.bf16.msra.mxu0 %v94
  %118 = vmatprep.subr.bf16.mxu0 0
  %119 = vmatpush1.bf16.msra.mxu0 %v95
  %120 = vmatprep.subr.bf16.mxu0 0
  %121 = vmatpush1.bf16.msra.mxu0 0
  %122 = vmatprep.subr.bf16.mxu0 0
  %123 = vmatpush1.bf16.msra.mxu0 0
  %124 = vmatprep.subr.bf16.mxu0 0
  %125 = vmatpush1.bf16.msra.mxu0 0
  %126 = vmatprep.subr.bf16.mxu0 0
  %127 = vmatpush1.bf16.msra.mxu0 0
  %128 = vmatprep.subr.bf16.mxu0 0
  %129 = vmatpush1.bf16.msra.mxu0 0
  %130 = vmatprep.subr.bf16.mxu0 0
  %131 = vmatpush1.bf16.msra.mxu0 0
  %132 = vmatprep.subr.bf16.mxu0 0
  %133 = vmatpush1.bf16.msra.mxu0 0
  %134 = vmatprep.subr.bf16.mxu0 0
  %135 = vmatpush1.bf16.msra.mxu0 0
  %136 = vmatprep.mubr.bf16.mxu0 0
  %137 = vmatmul.mubr.bf16.gmra.mrb[0].mxu0 %v54
  %v138 = vpop.f32.mrb[0].mxu0
  %v139 = vadd.f32 0.0, %v138
  %v140 = vpop.f32.mrb[0].mxu0
  %v141 = vpop.f32.mrb[0].mxu0
  %v142 = vadd.f32 0.0, %v141
  %v143 = vpop.f32.mrb[0].mxu0
  %144 = vdwg.mxu0
  %v145 = vadd.f32 %v30, %v139
  %v146 = vadd.f32 %v31, %v142
  %147 = vst [vmem:[#allocation2] sm:$0xff] %v145
  %148 = vst [vmem:[#allocation2 + $0x8] sm:$0xff] %v146
  // Predicated region
  $region30: #{te_model_forward.14} parent=0 // pred_check
    %p149 = pneg %p24
  $region31: #{te_model_forward.14} parent=0 // pred_check_branch
    %151 = sbr.rel (%p149) target = $region33
  $region32: #{te_model_forward.14} parent=0 // pred_region
    %v152 = vld [vmem:[#allocation2] sm:$0xff]
    %v153 = vld [vmem:[#allocation2 + $0x8] sm:$0xff]
    %v154 = vld [vmem:[%s2] sm:$0x1]
    %v156 = vlaneseq
    %v157 = vshrl.u32 %v156, 7
    %v158 = vsub.s32 0, %v157
    %v159 = vrot.slane %v154, %v158
    %v161 = vadd.f32 %v152, %v159
    %v162 = vadd.f32 %v153, %v159
    %v163 = vld [vmem:[%s3] sm:$0xff]
    %v164 = vld [vmem:[%s3 + $0x8] sm:$0xff]
    %v165 = vadd.f32 %v161, %v163
    %v166 = vadd.f32 %v162, %v164
    %167 = vadd.xlane.f32.xlu0 %v165
    %v168 = vpop.xlane.xlu0 %167
    %169 = vadd.xlane.f32.xlu0 %v166
    %v170 = vpop.xlane.xlu0 %169
    %v171 = vmul.f32 %v168, 0.03125
    %v172 = vmul.f32 %v170, 0.03125
    %v173 = vlaneseq
    %v174 = vand.u32 %v173, 127
    %vm175 = vcmp.lt.s32.totalorder %v174, 32
    %v176 = vsub.f32 %v165, %v171
    %v177 = vsub.f32 %v166, %v172
    %v178 = vsel %vm175, %v176, 0.0
    %v179 = vsel %vm175, %v177, 0.0
    %v180 = vmul.f32 %v178, %v178
    %v181 = vmul.f32 %v179, %v179
    %182 = vadd.xlane.f32.xlu0 %v180
    %v183 = vpop.xlane.xlu0 %182
    %184 = vadd.xlane.f32.xlu0 %v181
    %v185 = vpop.xlane.xlu0 %184
    %v186 = vmul.f32 %v183, 0.03125
    %v187 = vmul.f32 %v185, 0.03125
    %v188 = vadd.f32 %v186, 1e-05
    %v189 = vadd.f32 %v187, 1e-05
    %v190 = vrsqrt.pop %v188
    %v191 = vrsqrt.pop %v189
    %v192 = vmul.f32 %v178, %v190
    %v193 = vmul.f32 %v179, %v191
    %v194 = vld [vmem:[%s4] sm:$0x1]
    %v196 = vlaneseq
    %v197 = vshrl.u32 %v196, 7
    %v198 = vsub.s32 0, %v197
    %v199 = vrot.slane %v194, %v198
    %v201 = vmul.f32 %v192, %v199
    %v202 = vmul.f32 %v193, %v199
    %v203 = vld [vmem:[%s5] sm:$0x1]
    %v205 = vlaneseq
    %v206 = vshrl.u32 %v205, 7
    %v207 = vsub.s32 0, %v206
    %v208 = vrot.slane %v203, %v207
    %v210 = vadd.f32 %v201, %v208
    %v211 = vadd.f32 %v202, %v208
    %212 = vst [vmem:[%s6] sm:$0xff] %v210
    %213 = vst [vmem:[%s6 + $0x8] sm:$0xff] %v211
  $region33: #{te_model_forward.14} parent=0 // pred_fallthru
    _
  // Predicated region
  $region34: #{te_model_forward.14} parent=0 // pred_check
    _
  $region35: #{te_model_forward.14} parent=0 // pred_check_branch
    %215 = sbr.rel (0) target = $region37
  $region36: #{te_model_forward.14} parent=0 // pred_region
    _
  $region37: #{te_model_forward.14} parent=0 // pred_fallthru
    _
  // Predicated region
  $region38: #{te_model_forward.14} parent=0 // pred_check
    _
  $region39: #{te_model_forward.14} parent=0 // pred_check_branch
    %217 = sbr.rel (0) target = $region41
  $region40: #{te_model_forward.14} parent=0 // pred_region
    _
  $region41: #{te_model_forward.14} parent=0 // pred_fallthru
    _

// kernel: te_model_forward.15
$region0: #{te_model_forward.15}
  #allocation0 [shape = 'u32[]', space=smem, size = 0x4, offset = 0x4, fixed_abs, tag = 'smem constant byte address 0x4 - core index']
  #allocation1 [shape = 'u32[144,128]{1,0:T(1,128)}', space=vmem, size = 0x12000, scoped, tag = 'internal scratch']
  #allocation2 [shape = 'f32[16,128]{1,0:T(8,128)}', space=vmem, size = 0x2000, scoped, tag = 'scratch operand']
  %s0 = inlined_call_operand.vmem [shape: f32[16,128], index: 0, kind: input, shape index: {}]
  %s1 = inlined_call_operand.vmem [shape: bf16[128,128], index: 1, kind: input, shape index: {}]
  %s2 = inlined_call_operand.vmem [shape: f32[1,128], index: 2, kind: input, shape index: {}]
  %s3 = inlined_call_operand.vmem [shape: bf16[16,128], index: 3, kind: output, shape index: {}]
  %s4 = sld [smem:[#allocation0]]
  $region30: #{te_model_forward.15} parent=0
    _
  %s6 = ssub.s32 1, %s4
  %s7 = scalar_select 0, %s6, %s4
  // Predicated region
  $region2: #{te_model_forward.15} parent=0 // pred_check
    _
  $region3: #{te_model_forward.15} parent=0 // pred_check_branch
    %9 = sbr.rel (0) target = $region5
  $region4: #{te_model_forward.15} parent=0 // pred_region
    _
  $region5: #{te_model_forward.15} parent=0 // pred_fallthru
    _
  // Predicated region
  $region6: #{te_model_forward.15} parent=0 // pred_check
    _
  $region7: #{te_model_forward.15} parent=0 // pred_check_branch
    %11 = sbr.rel (0) target = $region9
  $region8: #{te_model_forward.15} parent=0 // pred_region
    _
  $region9: #{te_model_forward.15} parent=0 // pred_fallthru
    _
  // Predicated region
  $region10: #{te_model_forward.15} parent=0 // pred_check
    _
  $region11: #{te_model_forward.15} parent=0 // pred_check_branch
    %13 = sbr.rel (0) target = $region13
  $region12: #{te_model_forward.15} parent=0 // pred_region
    _
  $region13: #{te_model_forward.15} parent=0 // pred_fallthru
    _
  %p15 = scmp.eq.s32.totalorder 0, 0
  // Predicated region
  $region14: #{te_model_forward.15} parent=0 // pred_check
    %p16 = pneg %p15
  $region15: #{te_model_forward.15} parent=0 // pred_check_branch
    %18 = sbr.rel (%p16) target = $region17
  $region16: #{te_model_forward.15} parent=0 // pred_region
    %19 = vst [vmem:[#allocation2] sm:$0xff] 0.0
    %20 = vst [vmem:[#allocation2 + $0x8] sm:$0xff] 0.0
  $region17: #{te_model_forward.15} parent=0 // pred_fallthru
    _
  %v21 = vld [vmem:[#allocation2] sm:$0xff]
  %v22 = vld [vmem:[#allocation2 + $0x8] sm:$0xff]
  %v23 = vld [vmem:[%s0] sm:$0xff]
  %v24 = vld [vmem:[%s0 + $0x8] sm:$0xff]
  %v25 = vpack.c.bf16 %v24, %v23
  %v26 = vld [vmem:[%s1] sm:$0xf]
  %v27 = vld [vmem:[%s1 + $0x4] sm:$0xf]
  %v28 = vld [vmem:[%s1 + $0x8] sm:$0xf]
  %v29 = vld [vmem:[%s1 + $0xc] sm:$0xf]
  %v30 = vld [vmem:[%s1 + $0x10] sm:$0xf]
  %v31 = vld [vmem:[%s1 + $0x14] sm:$0xf]
  %v32 = vld [vmem:[%s1 + $0x18] sm:$0xf]
  %v33 = vld [vmem:[%s1 + $0x1c] sm:$0xf]
  %v34 = vld [vmem:[%s1 + $0x20] sm:$0xf]
  %v35 = vld [vmem:[%s1 + $0x24] sm:$0xf]
  %v36 = vld [vmem:[%s1 + $0x28] sm:$0xf]
  %v37 = vld [vmem:[%s1 + $0x2c] sm:$0xf]
  %v38 = vld [vmem:[%s1 + $0x30] sm:$0xf]
  %v39 = vld [vmem:[%s1 + $0x34] sm:$0xf]
  %v40 = vld [vmem:[%s1 + $0x38] sm:$0xf]
  %v41 = vld [vmem:[%s1 + $0x3c] sm:$0xf]
  %v58 = vunpack.c.l.b16 %v26
  %v59 = vunpack.c.l.b16 %v27
  %v60 = vunpack.c.l.b16 %v28
  %v61 = vunpack.c.l.b16 %v29
  %v62 = vunpack.c.l.b16 %v30
  %v63 = vunpack.c.l.b16 %v31
  %v64 = vunpack.c.l.b16 %v32
  %v65 = vunpack.c.l.b16 %v33
  %v66 = vunpack.c.l.b16 %v34
  %v67 = vunpack.c.l.b16 %v35
  %v68 = vunpack.c.l.b16 %v36
  %v69 = vunpack.c.l.b16 %v37
  %v70 = vunpack.c.l.b16 %v38
  %v71 = vunpack.c.l.b16 %v39
  %v72 = vunpack.c.l.b16 %v40
  %v73 = vunpack.c.l.b16 %v41
  %v74 = vpack.c.b16 %v59, %v58
  %v75 = vpack.c.b16 %v61, %v60
  %v76 = vpack.c.b16 %v63, %v62
  %v77 = vpack.c.b16 %v65, %v64
  %v78 = vpack.c.b16 %v67, %v66
  %v79 = vpack.c.b16 %v69, %v68
  %v80 = vpack.c.b16 %v71, %v70
  %v81 = vpack.c.b16 %v73, %v72
  %90 = vmatprep.subr.bf16.mxu0 0
  %91 = vmatpush1.bf16.msra.mxu0 %v74
  %92 = vmatprep.subr.bf16.mxu0 0
  %93 = vmatpush1.bf16.msra.mxu0 %v75
  %94 = vmatprep.subr.bf16.mxu0 0
  %95 = vmatpush1.bf16.msra.mxu0 %v76
  %96 = vmatprep.subr.bf16.mxu0 0
  %97 = vmatpush1.bf16.msra.mxu0 %v77
  %98 = vmatprep.subr.bf16.mxu0 0
  %99 = vmatpush1.bf16.msra.mxu0 %v78
  %100 = vmatprep.subr.bf16.mxu0 0
  %101 = vmatpush1.bf16.msra.mxu0 %v79
  %102 = vmatprep.subr.bf16.mxu0 0
  %103 = vmatpush1.bf16.msra.mxu0 %v80
  %104 = vmatprep.subr.bf16.mxu0 0
  %105 = vmatpush1.bf16.msra.mxu0 %v81
  %106 = vmatprep.subr.bf16.mxu0 0
  %107 = vmatpush1.bf16.msra.mxu0 0
  %108 = vmatprep.subr.bf16.mxu0 0
  %109 = vmatpush1.bf16.msra.mxu0 0
  %110 = vmatprep.subr.bf16.mxu0 0
  %111 = vmatpush1.bf16.msra.mxu0 0
  %112 = vmatprep.subr.bf16.mxu0 0
  %113 = vmatpush1.bf16.msra.mxu0 0
  %114 = vmatprep.subr.bf16.mxu0 0
  %115 = vmatpush1.bf16.msra.mxu0 0
  %116 = vmatprep.subr.bf16.mxu0 0
  %117 = vmatpush1.bf16.msra.mxu0 0
  %118 = vmatprep.subr.bf16.mxu0 0
  %119 = vmatpush1.bf16.msra.mxu0 0
  %120 = vmatprep.subr.bf16.mxu0 0
  %121 = vmatpush1.bf16.msra.mxu0 0
  %122 = vmatprep.mubr.bf16.mxu0 0
  %123 = vmatmul.mubr.bf16.gmra.mrb[0].mxu0 %v25
  %v124 = vpop.f32.mrb[0].mxu0
  %v125 = vadd.f32 0.0, %v124
  %v126 = vpop.f32.mrb[0].mxu0
  %v127 = vpop.f32.mrb[0].mxu0
  %v128 = vadd.f32 0.0, %v127
  %v129 = vpop.f32.mrb[0].mxu0
  %130 = vdwg.mxu0
  %v131 = vadd.f32 %v21, %v125
  %v132 = vadd.f32 %v22, %v128
  %133 = vst [vmem:[#allocation2] sm:$0xff] %v131
  %134 = vst [vmem:[#allocation2 + $0x8] sm:$0xff] %v132
  // Predicated region
  $region18: #{te_model_forward.15} parent=0 // pred_check
    %p135 = pneg %p15
  $region19: #{te_model_forward.15} parent=0 // pred_check_branch
    %137 = sbr.rel (%p135) target = $region21
  $region20: #{te_model_forward.15} parent=0 // pred_region
    %v138 = vld [vmem:[#allocation2] sm:$0xff]
    %v139 = vld [vmem:[#allocation2 + $0x8] sm:$0xff]
    %v140 = vld [vmem:[%s2] sm:$0x1]
    %v142 = vlaneseq
    %v143 = vshrl.u32 %v142, 7
    %v144 = vsub.s32 0, %v143
    %v145 = vrot.slane %v140, %v144
    %v147 = vadd.f32 %v138, %v145
    %v148 = vadd.f32 %v139, %v145
    %v149 = vmax.f32 %v147, 0.0
    %v150 = vmax.f32 %v148, 0.0
    %v151 = vpack.c.bf16 %v150, %v149
    %v153 = vunpack.c.l.b16 %v151
    %v154 = vunpack.c.h.b16 %v151
    %v155 = vpack.c.b16 %v153, %v153
    %v156 = vpack.c.b16 %v154, %v154
    %159 = vst [vmem:[%s3] sm:$0xf] %v155
    %160 = vst [vmem:[%s3 + $0x4] sm:$0xf] %v156
  $region21: #{te_model_forward.15} parent=0 // pred_fallthru
    _
  // Predicated region
  $region22: #{te_model_forward.15} parent=0 // pred_check
    _
  $region23: #{te_model_forward.15} parent=0 // pred_check_branch
    %162 = sbr.rel (0) target = $region25
  $region24: #{te_model_forward.15} parent=0 // pred_region
    _
  $region25: #{te_model_forward.15} parent=0 // pred_fallthru
    _
  // Predicated region
  $region26: #{te_model_forward.15} parent=0 // pred_check
    _
  $region27: #{te_model_forward.15} parent=0 // pred_check_branch
    %164 = sbr.rel (0) target = $region29
  $region28: #{te_model_forward.15} parent=0 // pred_region
    _
  $region29: #{te_model_forward.15} parent=0 // pred_fallthru
    _

// kernel: te_model_forward.17
$region0: #{te_model_forward.17}
  #allocation0 [shape = 'u32[]', space=smem, size = 0x4, offset = 0x4, fixed_abs, tag = 'smem constant byte address 0x4 - core index']
  #allocation1 [shape = 'u32[144,128]{1,0:T(1,128)}', space=vmem, size = 0x12000, scoped, tag = 'internal scratch']
  #allocation2 [shape = 'f32[16,384]{1,0:T(8,128)}', space=vmem, size = 0x6000, scoped, tag = 'scratch operand']
  %s0 = inlined_call_operand.vmem [shape: f32[16,128], index: 0, kind: input, shape index: {}]
  %s1 = inlined_call_operand.vmem [shape: bf16[128,384], index: 1, kind: input, shape index: {}]
  %s2 = inlined_call_operand.vmem [shape: f32[1,384], index: 2, kind: input, shape index: {}]
  %s3 = inlined_call_operand.vmem [shape: bf16[16,384], index: 3, kind: output, shape index: {}]
  %s4 = sld [smem:[#allocation0]]
  $region30: #{te_model_forward.17} parent=0
    _
  %s6 = ssub.s32 1, %s4
  %s7 = scalar_select 0, %s6, %s4
  // Predicated region
  $region2: #{te_model_forward.17} parent=0 // pred_check
    _
  $region3: #{te_model_forward.17} parent=0 // pred_check_branch
    %9 = sbr.rel (0) target = $region5
  $region4: #{te_model_forward.17} parent=0 // pred_region
    _
  $region5: #{te_model_forward.17} parent=0 // pred_fallthru
    _
  // Predicated region
  $region6: #{te_model_forward.17} parent=0 // pred_check
    _
  $region7: #{te_model_forward.17} parent=0 // pred_check_branch
    %11 = sbr.rel (0) target = $region9
  $region8: #{te_model_forward.17} parent=0 // pred_region
    _
  $region9: #{te_model_forward.17} parent=0 // pred_fallthru
    _
  // Predicated region
  $region10: #{te_model_forward.17} parent=0 // pred_check
    _
  $region11: #{te_model_forward.17} parent=0 // pred_check_branch
    %13 = sbr.rel (0) target = $region13
  $region12: #{te_model_forward.17} parent=0 // pred_region
    _
  $region13: #{te_model_forward.17} parent=0 // pred_fallthru
    _
  %p15 = scmp.eq.s32.totalorder 0, 0
  // Predicated region
  $region14: #{te_model_forward.17} parent=0 // pred_check
    %p16 = pneg %p15
  $region15: #{te_model_forward.17} parent=0 // pred_check_branch
    %18 = sbr.rel (%p16) target = $region17
  $region16: #{te_model_forward.17} parent=0 // pred_region
    %19 = vst [vmem:[#allocation2] sm:$0xff] 0.0
    %20 = vst [vmem:[#allocation2 + $0x8] sm:$0xff] 0.0
    %21 = vst [vmem:[#allocation2 + $0x10] sm:$0xff] 0.0
    %22 = vst [vmem:[#allocation2 + $0x18] sm:$0xff] 0.0
    %23 = vst [vmem:[#allocation2 + $0x20] sm:$0xff] 0.0
    %24 = vst [vmem:[#allocation2 + $0x28] sm:$0xff] 0.0
  $region17: #{te_model_forward.17} parent=0 // pred_fallthru
    _
  %v25 = vld [vmem:[#allocation2] sm:$0xff]
  %v26 = vld [vmem:[#allocation2 + $0x8] sm:$0xff]
  %v27 = vld [vmem:[#allocation2 + $0x10] sm:$0xff]
  %v28 = vld [vmem:[#allocation2 + $0x18] sm:$0xff]
  %v29 = vld [vmem:[#allocation2 + $0x20] sm:$0xff]
  %v30 = vld [vmem:[#allocation2 + $0x28] sm:$0xff]
  %v31 = vld [vmem:[%s0] sm:$0xff]
  %v32 = vld [vmem:[%s0 + $0x8] sm:$0xff]
  %v33 = vpack.c.bf16 %v32, %v31
  %v34 = vld [vmem:[%s1] sm:$0xff]
  %v35 = vld [vmem:[%s1 + $0x8] sm:$0xf]
  %v36 = vld [vmem:[%s1 + $0xc] sm:$0xff]
  %v37 = vld [vmem:[%s1 + $0x14] sm:$0xf]
  %v38 = vld [vmem:[%s1 + $0x18] sm:$0xff]
  %v39 = vld [vmem:[%s1 + $0x20] sm:$0xf]
  %v40 = vld [vmem:[%s1 + $0x24] sm:$0xff]
  %v41 = vld [vmem:[%s1 + $0x2c] sm:$0xf]
  %v42 = vld [vmem:[%s1 + $0x30] sm:$0xff]
  %v43 = vld [vmem:[%s1 + $0x38] sm:$0xf]
  %v44 = vld [vmem:[%s1 + $0x3c] sm:$0xff]
  %v45 = vld [vmem:[%s1 + $0x44] sm:$0xf]
  %v46 = vld [vmem:[%s1 + $0x48] sm:$0xff]
  %v47 = vld [vmem:[%s1 + $0x50] sm:$0xf]
  %v48 = vld [vmem:[%s1 + $0x54] sm:$0xff]
  %v49 = vld [vmem:[%s1 + $0x5c] sm:$0xf]
  %v50 = vld [vmem:[%s1 + $0x60] sm:$0xff]
  %v51 = vld [vmem:[%s1 + $0x68] sm:$0xf]
  %v52 = vld [vmem:[%s1 + $0x6c] sm:$0xff]
  %v53 = vld [vmem:[%s1 + $0x74] sm:$0xf]
  %v54 = vld [vmem:[%s1 + $0x78] sm:$0xff]
  %v55 = vld [vmem:[%s1 + $0x80] sm:$0xf]
  %v56 = vld [vmem:[%s1 + $0x84] sm:$0xff]
  %v57 = vld [vmem:[%s1 + $0x8c] sm:$0xf]
  %v58 = vld [vmem:[%s1 + $0x90] sm:$0xff]
  %v59 = vld [vmem:[%s1 + $0x98] sm:$0xf]
  %v60 = vld [vmem:[%s1 + $0x9c] sm:$0xff]
  %v61 = vld [vmem:[%s1 + $0xa4] sm:$0xf]
  %v62 = vld [vmem:[%s1 + $0xa8] sm:$0xff]
  %v63 = vld [vmem:[%s1 + $0xb0] sm:$0xf]
  %v64 = vld [vmem:[%s1 + $0xb4] sm:$0xff]
  %v65 = vld [vmem:[%s1 + $0xbc] sm:$0xf]
  %v98 = vunpack.c.l.b16 %v34
  %v99 = vunpack.c.h.b16 %v34
  %v100 = vunpack.c.l.b16 %v35
  %v101 = vunpack.c.l.b16 %v36
  %v102 = vunpack.c.h.b16 %v36
  %v103 = vunpack.c.l.b16 %v37
  %v104 = vunpack.c.l.b16 %v38
  %v105 = vunpack.c.h.b16 %v38
  %v106 = vunpack.c.l.b16 %v39
  %v107 = vunpack.c.l.b16 %v40
  %v108 = vunpack.c.h.b16 %v40
  %v109 = vunpack.c.l.b16 %v41
  %v110 = vunpack.c.l.b16 %v42
  %v111 = vunpack.c.h.b16 %v42
  %v112 = vunpack.c.l.b16 %v43
  %v113 = vunpack.c.l.b16 %v44
  %v114 = vunpack.c.h.b16 %v44
  %v115 = vunpack.c.l.b16 %v45
  %v116 = vunpack.c.l.b16 %v46
  %v117 = vunpack.c.h.b16 %v46
  %v118 = vunpack.c.l.b16 %v47
  %v119 = vunpack.c.l.b16 %v48
  %v120 = vunpack.c.h.b16 %v48
  %v121 = vunpack.c.l.b16 %v49
  %v122 = vunpack.c.l.b16 %v50
  %v123 = vunpack.c.h.b16 %v50
  %v124 = vunpack.c.l.b16 %v51
  %v125 = vunpack.c.l.b16 %v52
  %v126 = vunpack.c.h.b16 %v52
  %v127 = vunpack.c.l.b16 %v53
  %v128 = vunpack.c.l.b16 %v54
  %v129 = vunpack.c.h.b16 %v54
  %v130 = vunpack.c.l.b16 %v55
  %v131 = vunpack.c.l.b16 %v56
  %v132 = vunpack.c.h.b16 %v56
  %v133 = vunpack.c.l.b16 %v57
  %v134 = vunpack.c.l.b16 %v58
  %v135 = vunpack.c.h.b16 %v58
  %v136 = vunpack.c.l.b16 %v59
  %v137 = vunpack.c.l.b16 %v60
  %v138 = vunpack.c.h.b16 %v60
  %v139 = vunpack.c.l.b16 %v61
  %v140 = vunpack.c.l.b16 %v62
  %v141 = vunpack.c.h.b16 %v62
  %v142 = vunpack.c.l.b16 %v63
  %v143 = vunpack.c.l.b16 %v64
  %v144 = vunpack.c.h.b16 %v64
  %v145 = vunpack.c.l.b16 %v65
  %v146 = vpack.c.b16 %v101, %v98
  %v147 = vpack.c.b16 %v102, %v99
  %v148 = vpack.c.b16 %v103, %v100
  %v149 = vpack.c.b16 %v107, %v104
  %v150 = vpack.c.b16 %v108, %v105
  %v151 = vpack.c.b16 %v109, %v106
  %v152 = vpack.c.b16 %v113, %v110
  %v153 = vpack.c.b16 %v114, %v111
  %v154 = vpack.c.b16 %v115, %v112
  %v155 = vpack.c.b16 %v119, %v116
  %v156 = vpack.c.b16 %v120, %v117
  %v157 = vpack.c.b16 %v121, %v118
  %v158 = vpack.c.b16 %v125, %v122
  %v159 = vpack.c.b16 %v126, %v123
  %v160 = vpack.c.b16 %v127, %v124
  %v161 = vpack.c.b16 %v131, %v128
  %v162 = vpack.c.b16 %v132, %v129
  %v163 = vpack.c.b16 %v133, %v130
  %v164 = vpack.c.b16 %v137, %v134
  %v165 = vpack.c.b16 %v138, %v135
  %v166 = vpack.c.b16 %v139, %v136
  %v167 = vpack.c.b16 %v143, %v140
  %v168 = vpack.c.b16 %v144, %v141
  %v169 = vpack.c.b16 %v145, %v142
  %194 = vmatprep.subr.bf16.mxu0 %v147
  %195 = vmatpush1.bf16.msra.mxu0 %v146
  %196 = vmatprep.subr.bf16.mxu0 %v150
  %197 = vmatpush1.bf16.msra.mxu0 %v149
  %198 = vmatprep.subr.bf16.mxu0 %v153
  %199 = vmatpush1.bf16.msra.mxu0 %v152
  %200 = vmatprep.subr.bf16.mxu0 %v156
  %201 = vmatpush1.bf16.msra.mxu0 %v155
  %202 = vmatprep.subr.bf16.mxu0 %v159
  %203 = vmatpush1.bf16.msra.mxu0 %v158
  %204 = vmatprep.subr.bf16.mxu0 %v162
  %205 = vmatpush1.bf16.msra.mxu0 %v161
  %206 = vmatprep.subr.bf16.mxu0 %v165
  %207 = vmatpush1.bf16.msra.mxu0 %v164
  %208 = vmatprep.subr.bf16.mxu0 %v168
  %209 = vmatpush1.bf16.msra.mxu0 %v167
  %210 = vmatprep.subr.bf16.mxu0 0
  %211 = vmatpush1.bf16.msra.mxu0 0
  %212 = vmatprep.subr.bf16.mxu0 0
  %213 = vmatpush1.bf16.msra.mxu0 0
  %214 = vmatprep.subr.bf16.mxu0 0
  %215 = vmatpush1.bf16.msra.mxu0 0
  %216 = vmatprep.subr.bf16.mxu0 0
  %217 = vmatpush1.bf16.msra.mxu0 0
  %218 = vmatprep.subr.bf16.mxu0 0
  %219 = vmatpush1.bf16.msra.mxu0 0
  %220 = vmatprep.subr.bf16.mxu0 0
  %221 = vmatpush1.bf16.msra.mxu0 0
  %222 = vmatprep.subr.bf16.mxu0 0
  %223 = vmatpush1.bf16.msra.mxu0 0
  %224 = vmatprep.subr.bf16.mxu0 0
  %225 = vmatpush1.bf16.msra.mxu0 0
  %226 = vmatprep.mubr.bf16.mxu0 0
  %227 = vmatmul.mubr.bf16.gmra.mrb[0].mxu0 %v33
  %v228 = vpop.f32.mrb[0].mxu0
  %v229 = vadd.f32 0.0, %v228
  %v230 = vpop.f32.mrb[0].mxu0
  %v231 = vadd.f32 0.0, %v230
  %v232 = vpop.f32.mrb[0].mxu0
  %v233 = vadd.f32 0.0, %v232
  %v234 = vpop.f32.mrb[0].mxu0
  %v235 = vadd.f32 0.0, %v234
  %236 = vdwg.mxu0
  %237 = vmatprep.subr.bf16.mxu0 0
  %238 = vmatpush1.bf16.msra.mxu0 %v148
  %239 = vmatprep.subr.bf16.mxu0 0
  %240 = vmatpush1.bf16.msra.mxu0 %v151
  %241 = vmatprep.subr.bf16.mxu0 0
  %242 = vmatpush1.bf16.msra.mxu0 %v154
  %243 = vmatprep.subr.bf16.mxu0 0
  %244 = vmatpush1.bf16.msra.mxu0 %v157
  %245 = vmatprep.subr.bf16.mxu0 0
  %246 = vmatpush1.bf16.msra.mxu0 %v160
  %247 = vmatprep.subr.bf16.mxu0 0
  %248 = vmatpush1.bf16.msra.mxu0 %v163
  %249 = vmatprep.subr.bf16.mxu0 0
  %250 = vmatpush1.bf16.msra.mxu0 %v166
  %251 = vmatprep.subr.bf16.mxu0 0
  %252 = vmatpush1.bf16.msra.mxu0 %v169
  %253 = vmatprep.subr.bf16.mxu0 0
  %254 = vmatpush1.bf16.msra.mxu0 0
  %255 = vmatprep.subr.bf16.mxu0 0
  %256 = vmatpush1.bf16.msra.mxu0 0
  %257 = vmatprep.subr.bf16.mxu0 0
  %258 = vmatpush1.bf16.msra.mxu0 0
  %259 = vmatprep.subr.bf16.mxu0 0
  %260 = vmatpush1.bf16.msra.mxu0 0
  %261 = vmatprep.subr.bf16.mxu0 0
  %262 = vmatpush1.bf16.msra.mxu0 0
  %263 = vmatprep.subr.bf16.mxu0 0
  %264 = vmatpush1.bf16.msra.mxu0 0
  %265 = vmatprep.subr.bf16.mxu0 0
  %266 = vmatpush1.bf16.msra.mxu0 0
  %267 = vmatprep.subr.bf16.mxu0 0
  %268 = vmatpush1.bf16.msra.mxu0 0
  %269 = vmatprep.mubr.bf16.mxu0 0
  %270 = vmatmul.mubr.bf16.gmra.mrb[0].mxu0 %v33
  %v271 = vpop.f32.mrb[0].mxu0
  %v272 = vadd.f32 0.0, %v271
  %v273 = vpop.f32.mrb[0].mxu0
  %v274 = vpop.f32.mrb[0].mxu0
  %v275 = vadd.f32 0.0, %v274
  %v276 = vpop.f32.mrb[0].mxu0
  %277 = vdwg.mxu0
  %v278 = vadd.f32 %v25, %v229
  %v279 = vadd.f32 %v26, %v231
  %v280 = vadd.f32 %v27, %v272
  %v281 = vadd.f32 %v28, %v233
  %v282 = vadd.f32 %v29, %v235
  %v283 = vadd.f32 %v30, %v275
  %284 = vst [vmem:[#allocation2] sm:$0xff] %v278
  %285 = vst [vmem:[#allocation2 + $0x8] sm:$0xff] %v279
  %286 = vst [vmem:[#allocation2 + $0x10] sm:$0xff] %v280
  %287 = vst [vmem:[#allocation2 + $0x18] sm:$0xff] %v281
  %288 = vst [vmem:[#allocation2 + $0x20] sm:$0xff] %v282
  %289 = vst [vmem:[#allocation2 + $0x28] sm:$0xff] %v283
  // Predicated region
  $region18: #{te_model_forward.17} parent=0 // pred_check
    %p290 = pneg %p15
  $region19: #{te_model_forward.17} parent=0 // pred_check_branch
    %292 = sbr.rel (%p290) target = $region21
  $region20: #{te_model_forward.17} parent=0 // pred_region
    %v293 = vld [vmem:[#allocation2] sm:$0xff]
    %v294 = vld [vmem:[#allocation2 + $0x8] sm:$0xff]
    %v295 = vld [vmem:[#allocation2 + $0x10] sm:$0xff]
    %v296 = vld [vmem:[#allocation2 + $0x18] sm:$0xff]
    %v297 = vld [vmem:[#allocation2 + $0x20] sm:$0xff]
    %v298 = vld [vmem:[#allocation2 + $0x28] sm:$0xff]
    %v299 = vld [vmem:[%s2] sm:$0x7]
    %v301 = vlaneseq
    %v302 = vshrl.u32 %v301, 7
    %v303 = vsub.s32 0, %v302
    %v304 = vrot.slane %v299, %v303
    %v305 = vlaneseq
    %v306 = vshrl.u32 %v305, 7
    %v307 = vsub.s32 1, %v306
    %v308 = vrot.slane %v299, %v307
    %v309 = vlaneseq
    %v310 = vshrl.u32 %v309, 7
    %v311 = vsub.s32 2, %v310
    %v312 = vrot.slane %v299, %v311
    %v316 = vadd.f32 %v293, %v304
    %v317 = vadd.f32 %v294, %v308
    %v318 = vadd.f32 %v295, %v312
    %v319 = vadd.f32 %v296, %v304
    %v320 = vadd.f32 %v297, %v308
    %v321 = vadd.f32 %v298, %v312
    %v322 = vpack.c.bf16 %v319, %v316
    %v323 = vpack.c.bf16 %v320, %v317
    %v324 = vpack.c.bf16 %v321, %v318
    %v328 = vunpack.c.l.b16 %v322
    %v329 = vunpack.c.l.b16 %v323
    %v330 = vunpack.c.l.b16 %v324
    %v331 = vunpack.c.h.b16 %v322
    %v332 = vunpack.c.h.b16 %v323
    %v333 = vunpack.c.h.b16 %v324
    %v334 = vpack.c.b16 %v329, %v328
    %v335 = vpack.c.b16 %v330, %v330
    %v336 = vpack.c.b16 %v332, %v331
    %v337 = vpack.c.b16 %v333, %v333
    %342 = vst [vmem:[%s3] sm:$0xff] %v334
    %343 = vst [vmem:[%s3 + $0x8] sm:$0xf] %v335
    %344 = vst [vmem:[%s3 + $0xc] sm:$0xff] %v336
    %345 = vst [vmem:[%s3 + $0x14] sm:$0xf] %v337
  $region21: #{te_model_forward.17} parent=0 // pred_fallthru
    _
  // Predicated region
  $region22: #{te_model_forward.17} parent=0 // pred_check
    _
  $region23: #{te_model_forward.17} parent=0 // pred_check_branch
    %347 = sbr.rel (0) target = $region25
  $region24: #{te_model_forward.17} parent=0 // pred_region
    _
  $region25: #{te_model_forward.17} parent=0 // pred_fallthru
    _
  // Predicated region
  $region26: #{te_model_forward.17} parent=0 // pred_check
    _
  $region27: #{te_model_forward.17} parent=0 // pred_check_branch
    %349 = sbr.rel (0) target = $region29
  $region28: #{te_model_forward.17} parent=0 // pred_region
    _
  $region29: #{te_model_forward.17} parent=0 // pred_fallthru
    _

</llo_original>
